<compile_context>
chip_gen: v7x
topology: tpu7x:2x2x1
jax: 0.10.0
libtpu: 0.0.40
codegen_flags: <defaults>
</compile_context>

<pallas_src>
import functools
import math

import jax
import jax.numpy as jnp
from jax.experimental import pallas as pl
from jax.experimental.pallas import tpu as pltpu


# ----------------------------- helpers -----------------------------

def _row_tile(m, target=256):
    """Pick a row-tile size: <=256 rows, divides M (fallback: whole M)."""
    if m <= target:
        return m
    for t in (target, 128, 64, 32, 16, 8):
        if m % t == 0:
            return t
    return m


def _cp(*sems):
    return pltpu.CompilerParams(
        dimension_semantics=tuple(sems),
        vmem_limit_bytes=32 * 1024 * 1024,
    )


def _bf16(x):
    return x.astype(jnp.bfloat16)


# ----------------------------- Pallas kernels -----------------------------

def _linear_kernel(x_ref, w_ref, b_ref, o_ref):
    # y = x @ W + b  (bf16 MXU, f32 accumulation)
    o_ref[...] = (
        jnp.dot(_bf16(x_ref[...]), _bf16(w_ref[...]),
                preferred_element_type=jnp.float32)
        + b_ref[...]
    )


def _ffn_add_ln_kernel(x_ref, w1_ref, b1_ref, w2_ref, b2_ref, g_ref, b_ref, o_ref):
    # LayerNorm(x + ReLU(x W1 + b1) W2 + b2) -- both matmuls + residual + LN fused.
    x = x_ref[...]
    h = jnp.maximum(
        jnp.dot(_bf16(x), _bf16(w1_ref[...]),
                preferred_element_type=jnp.float32) + b1_ref[...],
        0.0,
    )
    f = (
        jnp.dot(_bf16(h), _bf16(w2_ref[...]),
                preferred_element_type=jnp.float32)
        + b2_ref[...]
    )
    s = x + f
    mu = jnp.mean(s, axis=-1, keepdims=True)
    c = s - mu
    var = jnp.mean(c * c, axis=-1, keepdims=True)
    o_ref[...] = c * jax.lax.rsqrt(var + 1e-5) * g_ref[...] + b_ref[...]


def _attention_kernel(q_ref, k_ref, v_ref, m_ref, o_ref, *, scale):
    # One (batch, head) grid step: q (Sq,dh), k/v (Sk,dh), mask (Sq,Sk).
    # TODO(synk): for long sequences, add a KV grid axis with online softmax
    # (flash style) so the (Sq, Sk) score tile never exceeds a block.
    q = _bf16(q_ref[...])
    k = _bf16(k_ref[...])
    v = _bf16(v_ref[...])
    s = jax.lax.dot_general(
        q, k, (((1,), (1,)), ((), ())), preferred_element_type=jnp.float32
    ) * scale
    s = jnp.where(m_ref[...] > 0.5, s, jnp.float32(-1e9))
    s = s - jnp.max(s, axis=-1, keepdims=True)
    p = jnp.exp(s)
    p = p * pl.reciprocal(jnp.sum(p, axis=-1, keepdims=True), approx=True)
    o_ref[...] = jnp.dot(_bf16(p), v, preferred_element_type=jnp.float32)


def _out_proj_add_ln_kernel(ctx_ref, x_ref, wo_ref, bo_ref, g_ref, b_ref, o_ref):
    # LayerNorm(x + concat_heads(ctx) @ Wo + bo), with the head merge done as a
    # per-head accumulated matmul (no transpose round-trip through HBM).
    # ctx_ref: (H, Sq, dh)   wo_ref: (H, dh, D)   x_ref: (Sq, D)
    n_heads = ctx_ref.shape[0]
    proj = jnp.dot(_bf16(ctx_ref[0]), _bf16(wo_ref[0]),
                   preferred_element_type=jnp.float32)
    for h in range(1, n_heads):
        proj = proj + jnp.dot(_bf16(ctx_ref[h]), _bf16(wo_ref[h]),
                              preferred_element_type=jnp.float32)
    s = x_ref[...] + proj + bo_ref[...]
    mu = jnp.mean(s, axis=-1, keepdims=True)
    c = s - mu
    var = jnp.mean(c * c, axis=-1, keepdims=True)
    o_ref[...] = c * jax.lax.rsqrt(var + 1e-5) * g_ref[...] + b_ref[...]


def _linear_logsoftmax_kernel(x_ref, w_ref, b_ref, o_ref):
    # log_softmax(x @ W + b, axis=-1), f32 softmax math.
    # TODO(synk): for large vocabularies tile the vocab axis with an online
    # logsumexp instead of holding the whole logits row block.
    logits = (
        jnp.dot(_bf16(x_ref[...]), _bf16(w_ref[...]),
                preferred_element_type=jnp.float32)
        + b_ref[...]
    )
    m = jnp.max(logits, axis=-1, keepdims=True)
    z = logits - m
    lse = jnp.log(jnp.sum(jnp.exp(z), axis=-1, keepdims=True))
    o_ref[...] = z - lse


# ----------------------------- kernel wrappers -----------------------------

def linear(x2d, w, b):
    M, K = x2d.shape
    N = w.shape[1]
    tm = _row_tile(M)
    return pl.pallas_call(
        _linear_kernel,
        out_shape=jax.ShapeDtypeStruct((M, N), jnp.float32),
        grid=(M // tm,),
        in_specs=[
            pl.BlockSpec((tm, K), lambda i: (i, 0)),
            pl.BlockSpec((K, N), lambda i: (0, 0)),   # weight resident across rows
            pl.BlockSpec((1, N), lambda i: (0, 0)),
        ],
        out_specs=pl.BlockSpec((tm, N), lambda i: (i, 0)),
        compiler_params=_cp("parallel"),
    )(x2d, w, b.reshape(1, N))


def ffn_add_ln(x, w1, b1, w2, b2, g, b):
    B, S, D = x.shape
    d_ff = w1.shape[1]
    M = B * S
    tm = _row_tile(M)
    y = pl.pallas_call(
        _ffn_add_ln_kernel,
        out_shape=jax.ShapeDtypeStruct((M, D), jnp.float32),
        grid=(M // tm,),
        in_specs=[
            pl.BlockSpec((tm, D), lambda i: (i, 0)),
            pl.BlockSpec((D, d_ff), lambda i: (0, 0)),
            pl.BlockSpec((1, d_ff), lambda i: (0, 0)),
            pl.BlockSpec((d_ff, D), lambda i: (0, 0)),
            pl.BlockSpec((1, D), lambda i: (0, 0)),
            pl.BlockSpec((1, D), lambda i: (0, 0)),
            pl.BlockSpec((1, D), lambda i: (0, 0)),
        ],
        out_specs=pl.BlockSpec((tm, D), lambda i: (i, 0)),
        compiler_params=_cp("parallel"),
    )(x.reshape(M, D), w1, b1.reshape(1, d_ff), w2, b2.reshape(1, D),
      g.reshape(1, D), b.reshape(1, D))
    return y.reshape(B, S, D)


def scaled_dot_attention(q, k, v, mask):
    # q: (B,H,Sq,dh)  k,v: (B,H,Sk,dh)  mask: (B,Sq,Sk)
    B, H, Sq, dh = q.shape
    Sk = k.shape[2]
    kern = functools.partial(_attention_kernel, scale=1.0 / math.sqrt(dh))
    return pl.pallas_call(
        kern,
        out_shape=jax.ShapeDtypeStruct((B, H, Sq, dh), jnp.float32),
        grid=(B, H),
        in_specs=[
            pl.BlockSpec((None, None, Sq, dh), lambda b, h: (b, h, 0, 0)),
            pl.BlockSpec((None, None, Sk, dh), lambda b, h: (b, h, 0, 0)),
            pl.BlockSpec((None, None, Sk, dh), lambda b, h: (b, h, 0, 0)),
            pl.BlockSpec((None, Sq, Sk), lambda b, h: (b, 0, 0)),  # shared over heads
        ],
        out_specs=pl.BlockSpec((None, None, Sq, dh), lambda b, h: (b, h, 0, 0)),
        compiler_params=_cp("parallel", "parallel"),
    )(q, k, v, mask)


def out_proj_add_ln(ctx, x, wo_h, bo, g, b):
    # ctx: (B,H,Sq,dh)  x: (B,Sq,D)  wo_h: (H,dh,D)
    B, H, Sq, dh = ctx.shape
    D = x.shape[-1]
    return pl.pallas_call(
        _out_proj_add_ln_kernel,
        out_shape=jax.ShapeDtypeStruct((B, Sq, D), jnp.float32),
        grid=(B,),
        in_specs=[
            pl.BlockSpec((None, H, Sq, dh), lambda bb: (bb, 0, 0, 0)),
            pl.BlockSpec((None, Sq, D), lambda bb: (bb, 0, 0)),
            pl.BlockSpec((H, dh, D), lambda bb: (0, 0, 0)),
            pl.BlockSpec((1, D), lambda bb: (0, 0)),
            pl.BlockSpec((1, D), lambda bb: (0, 0)),
            pl.BlockSpec((1, D), lambda bb: (0, 0)),
        ],
        out_specs=pl.BlockSpec((None, Sq, D), lambda bb: (bb, 0, 0)),
        compiler_params=_cp("parallel"),
    )(ctx, x, wo_h, bo.reshape(1, D), g.reshape(1, D), b.reshape(1, D))


def final_linear_logsoftmax(x2d, w, b):
    M, D = x2d.shape
    V = w.shape[1]
    tm = _row_tile(M)
    return pl.pallas_call(
        _linear_logsoftmax_kernel,
        out_shape=jax.ShapeDtypeStruct((M, V), jnp.float32),
        grid=(M // tm,),
        in_specs=[
            pl.BlockSpec((tm, D), lambda i: (i, 0)),
            pl.BlockSpec((D, V), lambda i: (0, 0)),
            pl.BlockSpec((1, V), lambda i: (0, 0)),
        ],
        out_specs=pl.BlockSpec((tm, V), lambda i: (i, 0)),
        compiler_params=_cp("parallel"),
    )(x2d, w, b.reshape(1, V))


# ----------------------------- model (glue) -----------------------------

def multi_head_attention(x_q, x_kv, mask, p, n_heads):
    """Returns per-head context (B, H, Sq, dh); output projection is fused
    with the following residual-add + LayerNorm (out_proj_add_ln)."""
    B, Sq, D = x_q.shape
    Sk = x_kv.shape[1]
    dh = D // n_heads
    H = n_heads

    if x_q is x_kv:
        # self-attention: single fused QKV matmul (N = 3*D)
        qkv = linear(x_q.reshape(B * Sq, D), p["w_qkv"], p["b_qkv"])
        qkv = qkv.reshape(B, Sq, 3, H, dh).transpose(2, 0, 3, 1, 4)
        q, k, v = qkv[0], qkv[1], qkv[2]
    else:
        # cross-attention: Q from decoder state, fused KV from encoder output
        q = linear(x_q.reshape(B * Sq, D), p["w_qkv"][:, :D], p["b_qkv"][:D])
        q = q.reshape(B, Sq, H, dh).transpose(0, 2, 1, 3)
        kv = linear(x_kv.reshape(B * Sk, D), p["w_qkv"][:, D:], p["b_qkv"][D:])
        kv = kv.reshape(B, Sk, 2, H, dh).transpose(2, 0, 3, 1, 4)
        k, v = kv[0], kv[1]

    # mask: (B,1,1,Sk) or (B,1,Sq,Sk) -> (B,Sq,Sk); shared across heads in-kernel
    m = jnp.broadcast_to(mask.reshape(B, mask.shape[-2], Sk), (B, Sq, Sk))
    m = m.astype(jnp.float32)
    return scaled_dot_attention(q, k, v, m)  # (B, H, Sq, dh)


def encode(params, source, source_mask, n_heads):
    # TODO(synk): embedding gather + sinusoidal PE kept in plain JAX (glue).
    emb = jnp.take(params["src_emb"], source, axis=0)
    D = emb.shape[-1]
    x = emb * math.sqrt(D) + params["pe"][: source.shape[1]][None, :, :]
    for lp in params["enc_layers"]:
        ap = lp["self_attn"]
        ctx = multi_head_attention(x, x, source_mask, ap, n_heads)
        x = out_proj_add_ln(ctx, x, ap["wo_h"], ap["bo"], lp["ln1_g"], lp["ln1_b"])
        x = ffn_add_ln(x, lp["ffn_w1"], lp["ffn_b1"], lp["ffn_w2"], lp["ffn_b2"],
                       lp["ln2_g"], lp["ln2_b"])
    return x


def decode(params, target, target_mask, enc_out, source_mask, n_heads):
    emb = jnp.take(params["tgt_emb"], target, axis=0)
    D = emb.shape[-1]
    x = emb * math.sqrt(D) + params["pe"][: target.shape[1]][None, :, :]
    for lp in params["dec_layers"]:
        ap = lp["self_attn"]
        ctx = multi_head_attention(x, x, target_mask, ap, n_heads)
        x = out_proj_add_ln(ctx, x, ap["wo_h"], ap["bo"], lp["ln1_g"], lp["ln1_b"])

        cp = lp["cross_attn"]
        ctx = multi_head_attention(x, enc_out, source_mask, cp, n_heads)
        x = out_proj_add_ln(ctx, x, cp["wo_h"], cp["bo"], lp["ln2_g"], lp["ln2_b"])

        x = ffn_add_ln(x, lp["ffn_w1"], lp["ffn_b1"], lp["ffn_w2"], lp["ffn_b2"],
                       lp["ln3_g"], lp["ln3_b"])
    return x


def transformer_forward(params, source, source_mask, target, target_mask, *, n_heads):
    enc = encode(params, source, source_mask, n_heads)
    dec = decode(params, target, target_mask, enc, source_mask, n_heads)
    B, St, D = dec.shape
    V = params["final_w"].shape[1]
    out = final_linear_logsoftmax(dec.reshape(B * St, D),
                                  params["final_w"], params["final_b"])
    return out.reshape(B, St, V)


# ----------------------------- parameter init -----------------------------

def sinusoidal_pe(max_len, d_model):
    pos = jnp.arange(max_len, dtype=jnp.float32)[:, None]
    i = jnp.arange(0, d_model, 2, dtype=jnp.float32)
    div = jnp.exp(-math.log(10000.0) * i / d_model)
    pe = jnp.zeros((max_len, d_model), jnp.float32)
    pe = pe.at[:, 0::2].set(jnp.sin(pos * div))
    pe = pe.at[:, 1::2].set(jnp.cos(pos * div))
    return pe


def init_transformer_params(key, *, src_vocab, tgt_vocab, d_model, d_ff,
                            n_layers, n_heads, max_len):
    keys = iter(jax.random.split(key, 1024))
    nk = lambda: next(keys)
    dh = d_model // n_heads

    def dense(fan_in, fan_out):
        w = jax.random.normal(nk(), (fan_in, fan_out), jnp.float32) * 0.02
        b = jnp.zeros((fan_out,), jnp.float32)
        return w, b

    def attn_block():
        # fused Wq|Wk|Wv along the output dim; Wo stored pre-split per head.
        wq, _ = dense(d_model, d_model)
        wk, _ = dense(d_model, d_model)
        wv, _ = dense(d_model, d_model)
        wo, bo = dense(d_model, d_model)
        return dict(
            w_qkv=jnp.concatenate([wq, wk, wv], axis=1),          # (D, 3D)
            b_qkv=jnp.zeros((3 * d_model,), jnp.float32),
            wo_h=wo.reshape(n_heads, dh, d_model),                # (H, dh, D)
            bo=bo,
        )

    def ffn_block():
        w1, b1 = dense(d_model, d_ff)
        w2, b2 = dense(d_ff, d_model)
        return w1, b1, w2, b2

    def ln():
        return jnp.ones((d_model,), jnp.float32), jnp.zeros((d_model,), jnp.float32)

    enc_layers = []
    for _ in range(n_layers):
        w1, b1, w2, b2 = ffn_block()
        g1, bb1 = ln()
        g2, bb2 = ln()
        enc_layers.append(dict(self_attn=attn_block(),
                               ffn_w1=w1, ffn_b1=b1, ffn_w2=w2, ffn_b2=b2,
                               ln1_g=g1, ln1_b=bb1, ln2_g=g2, ln2_b=bb2))

    dec_layers = []
    for _ in range(n_layers):
        w1, b1, w2, b2 = ffn_block()
        g1, bb1 = ln()
        g2, bb2 = ln()
        g3, bb3 = ln()
        dec_layers.append(dict(self_attn=attn_block(), cross_attn=attn_block(),
                               ffn_w1=w1, ffn_b1=b1, ffn_w2=w2, ffn_b2=b2,
                               ln1_g=g1, ln1_b=bb1, ln2_g=g2, ln2_b=bb2,
                               ln3_g=g3, ln3_b=bb3))

    final_w, final_b = dense(d_model, tgt_vocab)
    return dict(
        src_emb=jax.random.normal(nk(), (src_vocab, d_model), jnp.float32) * 0.02,
        tgt_emb=jax.random.normal(nk(), (tgt_vocab, d_model), jnp.float32) * 0.02,
        pe=sinusoidal_pe(max_len, d_model),
        enc_layers=enc_layers,
        dec_layers=dec_layers,
        final_w=final_w,
        final_b=final_b,
    )


# ----------------------------- main -----------------------------

if __name__ == "__main__":
    B = 2
    S_SRC, S_TGT = 8, 8
    SRC_VOCAB, TGT_VOCAB = 11, 13
    D_MODEL, N_LAYERS, N_HEADS, D_FF = 32, 2, 4, 64
    MAX_LEN = 16

    key = jax.random.PRNGKey(0)
    kp, ks, kt = jax.random.split(key, 3)
    params = init_transformer_params(
        kp, src_vocab=SRC_VOCAB, tgt_vocab=TGT_VOCAB, d_model=D_MODEL,
        d_ff=D_FF, n_layers=N_LAYERS, n_heads=N_HEADS, max_len=MAX_LEN)

    source = jax.random.randint(ks, (B, S_SRC), 0, SRC_VOCAB)
    target = jax.random.randint(kt, (B, S_TGT), 0, TGT_VOCAB)
    # padding mask (all valid) and causal target mask, broadcastable to (B,H,Sq,Sk)
    source_mask = jnp.ones((B, 1, 1, S_SRC), jnp.float32)
    causal = jnp.tril(jnp.ones((S_TGT, S_TGT), jnp.float32))
    target_mask = jnp.broadcast_to(causal, (B, 1, S_TGT, S_TGT))

    fwd = jax.jit(functools.partial(transformer_forward, n_heads=N_HEADS))
    out = fwd(params, source, source_mask, target, target_mask)
    out = jax.block_until_ready(out)

    assert out.shape == (B, S_TGT, TGT_VOCAB), out.shape
    assert bool(jnp.all(jnp.isfinite(out)))
    # log_softmax rows must exponentiate-sum to 1
    assert bool(jnp.allclose(jnp.exp(out).sum(-1), 1.0, atol=1e-4))
    print("KERNEL_OK")
</pallas_src>

<mosaic_0001>
module attributes {stable_mosaic.version = 11 : i64} {
  func.func @_linear_kernel(%arg0: i32, %arg1: memref<16x32xf32, #tpu.memory_space<vmem>>, %arg2: memref<32x96xf32, #tpu.memory_space<vmem>>, %arg3: memref<1x96xf32, #tpu.memory_space<vmem>>, %arg4: memref<16x96xf32, #tpu.memory_space<vmem>>) attributes {dimension_semantics = [#tpu.dimension_semantics<parallel>], iteration_bounds = array<i64: 1>, scalar_prefetch = 0 : i64, scratch_operands = 0 : i64, tpu.core_type = #tpu.core_type<tc>, window_params = [{transform_indices = @transform_0, window_bounds = array<i64: 16, 32>}, {pipeline_mode = #tpu.pipeline_mode<synchronous>, transform_indices = @transform_1, window_bounds = array<i64: 32, 96>}, {pipeline_mode = #tpu.pipeline_mode<synchronous>, transform_indices = @transform_2, window_bounds = array<i64: 1, 96>}, {transform_indices = @transform_3, window_bounds = array<i64: 16, 96>}]} {
    %c0 = arith.constant 0 : index
    %c0_0 = arith.constant 0 : index
    %0 = vector.load %arg1[%c0, %c0_0] : memref<16x32xf32, #tpu.memory_space<vmem>>, vector<16x32xf32>
    %1 = arith.truncf %0 : vector<16x32xf32> to vector<16x32xbf16>
    %c0_1 = arith.constant 0 : index
    %c0_2 = arith.constant 0 : index
    %2 = vector.load %arg2[%c0_1, %c0_2] : memref<32x96xf32, #tpu.memory_space<vmem>>, vector<32x96xf32>
    %3 = arith.truncf %2 : vector<32x96xf32> to vector<32x96xbf16>
    %cst = arith.constant dense<0.000000e+00> : vector<16x96xf32>
    %4 = tpu.matmul %1, %3, %cst {dimension_numbers = #tpu.dot_dimension_numbers<[1], [0], [0], [1], [0, 0, 1, 1], [], []>} : vector<16x32xbf16>, vector<32x96xbf16>, vector<16x96xf32> -> vector<16x96xf32>
    %c0_3 = arith.constant 0 : index
    %c0_4 = arith.constant 0 : index
    %5 = vector.load %arg3[%c0_3, %c0_4] : memref<1x96xf32, #tpu.memory_space<vmem>>, vector<1x96xf32>
    %6 = vector.broadcast %5 : vector<1x96xf32> to vector<16x96xf32>
    %7 = arith.addf %4, %6 : vector<16x96xf32>
    %c0_5 = arith.constant 0 : index
    %c0_6 = arith.constant 0 : index
    %8 = vector.load %arg4[%c0_5, %c0_6] : memref<16x96xf32, #tpu.memory_space<vmem>>, vector<16x96xf32>
    tpu.vector_store %arg4[%c0_5, %c0_6], %7 {strides = array<i32>} : memref<16x96xf32, #tpu.memory_space<vmem>>, vector<16x96xf32>,
    return
  }
  func.func @transform_0(%arg0: i32) -> (i32, i32) {
    %c0_i32 = arith.constant 0 : i32
    %c0_i32_0 = arith.constant 0 : i32
    return %arg0, %c0_i32 : i32, i32
  }
  func.func @transform_1(%arg0: i32) -> (i32, i32) {
    %c0_i32 = arith.constant 0 : i32
    %c0_i32_0 = arith.constant 0 : i32
    %c0_i32_1 = arith.constant 0 : i32
    return %c0_i32, %c0_i32_0 : i32, i32
  }
  func.func @transform_2(%arg0: i32) -> (i32, i32) {
    %c0_i32 = arith.constant 0 : i32
    %c0_i32_0 = arith.constant 0 : i32
    %c0_i32_1 = arith.constant 0 : i32
    return %c0_i32, %c0_i32_0 : i32, i32
  }
  func.func @transform_3(%arg0: i32) -> (i32, i32) {
    %c0_i32 = arith.constant 0 : i32
    %c0_i32_0 = arith.constant 0 : i32
    return %arg0, %c0_i32 : i32, i32
  }
}

module attributes {stable_mosaic.version = 11 : i64} {
  func.func @_attention_kernel(%arg0: i32, %arg1: i32, %arg2: memref<1x1x8x8xf32, #tpu.memory_space<vmem>>, %arg3: memref<1x1x8x8xf32, #tpu.memory_space<vmem>>, %arg4: memref<1x1x8x8xf32, #tpu.memory_space<vmem>>, %arg5: memref<1x8x8xf32, #tpu.memory_space<vmem>>, %arg6: memref<1x1x8x8xf32, #tpu.memory_space<vmem>>) attributes {dimension_semantics = [#tpu.dimension_semantics<parallel>, #tpu.dimension_semantics<parallel>], iteration_bounds = array<i64: 2, 4>, scalar_prefetch = 0 : i64, scratch_operands = 0 : i64, tpu.core_type = #tpu.core_type<tc>, window_params = [{transform_indices = @transform_0, window_bounds = array<i64: 1, 1, 8, 8>}, {transform_indices = @transform_1, window_bounds = array<i64: 1, 1, 8, 8>}, {transform_indices = @transform_2, window_bounds = array<i64: 1, 1, 8, 8>}, {transform_indices = @transform_3, window_bounds = array<i64: 1, 8, 8>}, {transform_indices = @transform_4, window_bounds = array<i64: 1, 1, 8, 8>}]} {
    %c0 = arith.constant 0 : index
    %c0_0 = arith.constant 0 : index
    %c0_1 = arith.constant 0 : index
    %c0_2 = arith.constant 0 : index
    %0 = vector.load %arg2[%c0, %c0_0, %c0_1, %c0_2] : memref<1x1x8x8xf32, #tpu.memory_space<vmem>>, vector<1x1x8x8xf32>
    %1 = vector.shape_cast %0 : vector<1x1x8x8xf32> to vector<8x8xf32>
    %2 = arith.truncf %1 : vector<8x8xf32> to vector<8x8xbf16>
    %c0_3 = arith.constant 0 : index
    %c0_4 = arith.constant 0 : index
    %c0_5 = arith.constant 0 : index
    %c0_6 = arith.constant 0 : index
    %3 = vector.load %arg3[%c0_3, %c0_4, %c0_5, %c0_6] : memref<1x1x8x8xf32, #tpu.memory_space<vmem>>, vector<1x1x8x8xf32>
    %4 = vector.shape_cast %3 : vector<1x1x8x8xf32> to vector<8x8xf32>
    %5 = arith.truncf %4 : vector<8x8xf32> to vector<8x8xbf16>
    %c0_7 = arith.constant 0 : index
    %c0_8 = arith.constant 0 : index
    %c0_9 = arith.constant 0 : index
    %c0_10 = arith.constant 0 : index
    %6 = vector.load %arg4[%c0_7, %c0_8, %c0_9, %c0_10] : memref<1x1x8x8xf32, #tpu.memory_space<vmem>>, vector<1x1x8x8xf32>
    %7 = vector.shape_cast %6 : vector<1x1x8x8xf32> to vector<8x8xf32>
    %8 = arith.truncf %7 : vector<8x8xf32> to vector<8x8xbf16>
    %cst = arith.constant dense<0.000000e+00> : vector<8x8xf32>
    %9 = tpu.matmul %2, %5, %cst {dimension_numbers = #tpu.dot_dimension_numbers<[1], [1], [0], [0], [0, 0, 1, 0], [], []>} : vector<8x8xbf16>, vector<8x8xbf16>, vector<8x8xf32> -> vector<8x8xf32>
    %cst_11 = arith.constant 0.353553385 : f32
    %10 = vector.broadcast %cst_11 : f32 to vector<8x8xf32>
    %11 = arith.mulf %9, %10 : vector<8x8xf32>
    %c0_12 = arith.constant 0 : index
    %c0_13 = arith.constant 0 : index
    %c0_14 = arith.constant 0 : index
    %12 = vector.load %arg5[%c0_12, %c0_13, %c0_14] : memref<1x8x8xf32, #tpu.memory_space<vmem>>, vector<1x8x8xf32>
    %13 = vector.shape_cast %12 : vector<1x8x8xf32> to vector<8x8xf32>
    %cst_15 = arith.constant 5.000000e-01 : f32
    %14 = vector.broadcast %cst_15 : f32 to vector<8x8xf32>
    %15 = arith.cmpf ogt, %13, %14 : vector<8x8xf32>
    %cst_16 = arith.constant -1.000000e+09 : f32
    %16 = vector.broadcast %cst_16 : f32 to vector<8x8xf32>
    %17 = arith.select %15, %11, %16 : vector<8x8xi1>, vector<8x8xf32>
    %cst_17 = arith.constant dense<0xFF800000> : vector<8xf32>
    %18 = vector.multi_reduction <maximumf>, %17, %cst_17 [1] : vector<8x8xf32> to vector<8xf32>
    %19 = vector.shape_cast %18 : vector<8xf32> to vector<8x1xf32>
    %20 = vector.broadcast %19 : vector<8x1xf32> to vector<8x8xf32>
    %21 = arith.subf %17, %20 : vector<8x8xf32>
    %22 = math.exp %21 : vector<8x8xf32>
    %cst_18 = arith.constant dense<0.000000e+00> : vector<8xf32>
    %23 = vector.multi_reduction <add>, %22, %cst_18 [1] : vector<8x8xf32> to vector<8xf32>
    %24 = vector.shape_cast %23 : vector<8xf32> to vector<8x1xf32>
    %25 = tpu.reciprocal %24 {approx = true} : vector<8x1xf32> -> vector<8x1xf32>
    %26 = vector.broadcast %25 : vector<8x1xf32> to vector<8x8xf32>
    %27 = arith.mulf %22, %26 : vector<8x8xf32>
    %28 = arith.truncf %27 : vector<8x8xf32> to vector<8x8xbf16>
    %cst_19 = arith.constant dense<0.000000e+00> : vector<8x8xf32>
    %29 = tpu.matmul %28, %8, %cst_19 {dimension_numbers = #tpu.dot_dimension_numbers<[1], [0], [0], [1], [0, 0, 1, 1], [], []>} : vector<8x8xbf16>, vector<8x8xbf16>, vector<8x8xf32> -> vector<8x8xf32>
    %c0_20 = arith.constant 0 : index
    %c0_21 = arith.constant 0 : index
    %c0_22 = arith.constant 0 : index
    %c0_23 = arith.constant 0 : index
    %30 = vector.load %arg6[%c0_20, %c0_21, %c0_22, %c0_23] : memref<1x1x8x8xf32, #tpu.memory_space<vmem>>, vector<1x1x8x8xf32>
    %31 = vector.shape_cast %30 : vector<1x1x8x8xf32> to vector<8x8xf32>
    %32 = vector.shape_cast %29 : vector<8x8xf32> to vector<1x1x8x8xf32>
    tpu.vector_store %arg6[%c0_20, %c0_21, %c0_22, %c0_23], %32 {strides = array<i32>} : memref<1x1x8x8xf32, #tpu.memory_space<vmem>>, vector<1x1x8x8xf32>,
    return
  }
  func.func @transform_0(%arg0: i32, %arg1: i32) -> (i32, i32, i32, i32) {
    %c0_i32 = arith.constant 0 : i32
    %c0_i32_0 = arith.constant 0 : i32
    %c0_i32_1 = arith.constant 0 : i32
    return %arg0, %arg1, %c0_i32, %c0_i32_0 : i32, i32, i32, i32
  }
  func.func @transform_1(%arg0: i32, %arg1: i32) -> (i32, i32, i32, i32) {
    %c0_i32 = arith.constant 0 : i32
    %c0_i32_0 = arith.constant 0 : i32
    %c0_i32_1 = arith.constant 0 : i32
    return %arg0, %arg1, %c0_i32, %c0_i32_0 : i32, i32, i32, i32
  }
  func.func @transform_2(%arg0: i32, %arg1: i32) -> (i32, i32, i32, i32) {
    %c0_i32 = arith.constant 0 : i32
    %c0_i32_0 = arith.constant 0 : i32
    %c0_i32_1 = arith.constant 0 : i32
    return %arg0, %arg1, %c0_i32, %c0_i32_0 : i32, i32, i32, i32
  }
  func.func @transform_3(%arg0: i32, %arg1: i32) -> (i32, i32, i32) {
    %c0_i32 = arith.constant 0 : i32
    %c0_i32_0 = arith.constant 0 : i32
    %c0_i32_1 = arith.constant 0 : i32
    return %arg0, %c0_i32, %c0_i32_0 : i32, i32, i32
  }
  func.func @transform_4(%arg0: i32, %arg1: i32) -> (i32, i32, i32, i32) {
    %c0_i32 = arith.constant 0 : i32
    %c0_i32_0 = arith.constant 0 : i32
    %c0_i32_1 = arith.constant 0 : i32
    return %arg0, %arg1, %c0_i32, %c0_i32_0 : i32, i32, i32, i32
  }
}

module attributes {stable_mosaic.version = 11 : i64} {
  func.func @_out_proj_add_ln_kernel(%arg0: i32, %arg1: memref<1x4x8x8xf32, #tpu.memory_space<vmem>>, %arg2: memref<1x8x32xf32, #tpu.memory_space<vmem>>, %arg3: memref<4x8x32xf32, #tpu.memory_space<vmem>>, %arg4: memref<1x32xf32, #tpu.memory_space<vmem>>, %arg5: memref<1x32xf32, #tpu.memory_space<vmem>>, %arg6: memref<1x32xf32, #tpu.memory_space<vmem>>, %arg7: memref<1x8x32xf32, #tpu.memory_space<vmem>>) attributes {dimension_semantics = [#tpu.dimension_semantics<parallel>], iteration_bounds = array<i64: 2>, scalar_prefetch = 0 : i64, scratch_operands = 0 : i64, tpu.core_type = #tpu.core_type<tc>, window_params = [{transform_indices = @transform_0, window_bounds = array<i64: 1, 4, 8, 8>}, {transform_indices = @transform_1, window_bounds = array<i64: 1, 8, 32>}, {pipeline_mode = #tpu.pipeline_mode<synchronous>, transform_indices = @transform_2, window_bounds = array<i64: 4, 8, 32>}, {pipeline_mode = #tpu.pipeline_mode<synchronous>, transform_indices = @transform_3, window_bounds = array<i64: 1, 32>}, {pipeline_mode = #tpu.pipeline_mode<synchronous>, transform_indices = @transform_4, window_bounds = array<i64: 1, 32>}, {pipeline_mode = #tpu.pipeline_mode<synchronous>, transform_indices = @transform_5, window_bounds = array<i64: 1, 32>}, {transform_indices = @transform_6, window_bounds = array<i64: 1, 8, 32>}]} {
    %c0 = arith.constant 0 : index
    %c0_0 = arith.constant 0 : index
    %c0_1 = arith.constant 0 : index
    %c0_2 = arith.constant 0 : index
    %0 = vector.load %arg1[%c0, %c0_0, %c0_1, %c0_2] : memref<1x4x8x8xf32, #tpu.memory_space<vmem>>, vector<1x1x8x8xf32>
    %1 = vector.shape_cast %0 : vector<1x1x8x8xf32> to vector<8x8xf32>
    %2 = arith.truncf %1 : vector<8x8xf32> to vector<8x8xbf16>
    %c0_3 = arith.constant 0 : index
    %c0_4 = arith.constant 0 : index
    %c0_5 = arith.constant 0 : index
    %3 = vector.load %arg3[%c0_3, %c0_4, %c0_5] : memref<4x8x32xf32, #tpu.memory_space<vmem>>, vector<1x8x32xf32>
    %4 = vector.shape_cast %3 : vector<1x8x32xf32> to vector<8x32xf32>
    %5 = arith.truncf %4 : vector<8x32xf32> to vector<8x32xbf16>
    %cst = arith.constant dense<0.000000e+00> : vector<8x32xf32>
    %6 = tpu.matmul %2, %5, %cst {dimension_numbers = #tpu.dot_dimension_numbers<[1], [0], [0], [1], [0, 0, 1, 1], [], []>} : vector<8x8xbf16>, vector<8x32xbf16>, vector<8x32xf32> -> vector<8x32xf32>
    %c0_6 = arith.constant 0 : index
    %c1 = arith.constant 1 : index
    %c0_7 = arith.constant 0 : index
    %c0_8 = arith.constant 0 : index
    %7 = vector.load %arg1[%c0_6, %c1, %c0_7, %c0_8] : memref<1x4x8x8xf32, #tpu.memory_space<vmem>>, vector<1x1x8x8xf32>
    %8 = vector.shape_cast %7 : vector<1x1x8x8xf32> to vector<8x8xf32>
    %9 = arith.truncf %8 : vector<8x8xf32> to vector<8x8xbf16>
    %c1_9 = arith.constant 1 : index
    %c0_10 = arith.constant 0 : index
    %c0_11 = arith.constant 0 : index
    %10 = vector.load %arg3[%c1_9, %c0_10, %c0_11] : memref<4x8x32xf32, #tpu.memory_space<vmem>>, vector<1x8x32xf32>
    %11 = vector.shape_cast %10 : vector<1x8x32xf32> to vector<8x32xf32>
    %12 = arith.truncf %11 : vector<8x32xf32> to vector<8x32xbf16>
    %cst_12 = arith.constant dense<0.000000e+00> : vector<8x32xf32>
    %13 = tpu.matmul %9, %12, %cst_12 {dimension_numbers = #tpu.dot_dimension_numbers<[1], [0], [0], [1], [0, 0, 1, 1], [], []>} : vector<8x8xbf16>, vector<8x32xbf16>, vector<8x32xf32> -> vector<8x32xf32>
    %14 = arith.addf %6, %13 : vector<8x32xf32>
    %c0_13 = arith.constant 0 : index
    %c2 = arith.constant 2 : index
    %c0_14 = arith.constant 0 : index
    %c0_15 = arith.constant 0 : index
    %15 = vector.load %arg1[%c0_13, %c2, %c0_14, %c0_15] : memref<1x4x8x8xf32, #tpu.memory_space<vmem>>, vector<1x1x8x8xf32>
    %16 = vector.shape_cast %15 : vector<1x1x8x8xf32> to vector<8x8xf32>
    %17 = arith.truncf %16 : vector<8x8xf32> to vector<8x8xbf16>
    %c2_16 = arith.constant 2 : index
    %c0_17 = arith.constant 0 : index
    %c0_18 = arith.constant 0 : index
    %18 = vector.load %arg3[%c2_16, %c0_17, %c0_18] : memref<4x8x32xf32, #tpu.memory_space<vmem>>, vector<1x8x32xf32>
    %19 = vector.shape_cast %18 : vector<1x8x32xf32> to vector<8x32xf32>
    %20 = arith.truncf %19 : vector<8x32xf32> to vector<8x32xbf16>
    %cst_19 = arith.constant dense<0.000000e+00> : vector<8x32xf32>
    %21 = tpu.matmul %17, %20, %cst_19 {dimension_numbers = #tpu.dot_dimension_numbers<[1], [0], [0], [1], [0, 0, 1, 1], [], []>} : vector<8x8xbf16>, vector<8x32xbf16>, vector<8x32xf32> -> vector<8x32xf32>
    %22 = arith.addf %14, %21 : vector<8x32xf32>
    %c0_20 = arith.constant 0 : index
    %c3 = arith.constant 3 : index
    %c0_21 = arith.constant 0 : index
    %c0_22 = arith.constant 0 : index
    %23 = vector.load %arg1[%c0_20, %c3, %c0_21, %c0_22] : memref<1x4x8x8xf32, #tpu.memory_space<vmem>>, vector<1x1x8x8xf32>
    %24 = vector.shape_cast %23 : vector<1x1x8x8xf32> to vector<8x8xf32>
    %25 = arith.truncf %24 : vector<8x8xf32> to vector<8x8xbf16>
    %c3_23 = arith.constant 3 : index
    %c0_24 = arith.constant 0 : index
    %c0_25 = arith.constant 0 : index
    %26 = vector.load %arg3[%c3_23, %c0_24, %c0_25] : memref<4x8x32xf32, #tpu.memory_space<vmem>>, vector<1x8x32xf32>
    %27 = vector.shape_cast %26 : vector<1x8x32xf32> to vector<8x32xf32>
    %28 = arith.truncf %27 : vector<8x32xf32> to vector<8x32xbf16>
    %cst_26 = arith.constant dense<0.000000e+00> : vector<8x32xf32>
    %29 = tpu.matmul %25, %28, %cst_26 {dimension_numbers = #tpu.dot_dimension_numbers<[1], [0], [0], [1], [0, 0, 1, 1], [], []>} : vector<8x8xbf16>, vector<8x32xbf16>, vector<8x32xf32> -> vector<8x32xf32>
    %30 = arith.addf %22, %29 : vector<8x32xf32>
    %c0_27 = arith.constant 0 : index
    %c0_28 = arith.constant 0 : index
    %c0_29 = arith.constant 0 : index
    %31 = vector.load %arg2[%c0_27, %c0_28, %c0_29] : memref<1x8x32xf32, #tpu.memory_space<vmem>>, vector<1x8x32xf32>
    %32 = vector.shape_cast %31 : vector<1x8x32xf32> to vector<8x32xf32>
    %33 = arith.addf %32, %30 : vector<8x32xf32>
    %c0_30 = arith.constant 0 : index
    %c0_31 = arith.constant 0 : index
    %34 = vector.load %arg4[%c0_30, %c0_31] : memref<1x32xf32, #tpu.memory_space<vmem>>, vector<1x32xf32>
    %35 = vector.broadcast %34 : vector<1x32xf32> to vector<8x32xf32>
    %36 = arith.addf %33, %35 : vector<8x32xf32>
    %cst_32 = arith.constant dense<0.000000e+00> : vector<8xf32>
    %37 = vector.multi_reduction <add>, %36, %cst_32 [1] : vector<8x32xf32> to vector<8xf32>
    %38 = vector.shape_cast %37 : vector<8xf32> to vector<8x1xf32>
    %cst_33 = arith.constant 3.200000e+01 : f32
    %39 = vector.broadcast %cst_33 : f32 to vector<8x1xf32>
    %40 = arith.divf %38, %39 : vector<8x1xf32>
    %41 = vector.broadcast %40 : vector<8x1xf32> to vector<8x32xf32>
    %42 = arith.subf %36, %41 : vector<8x32xf32>
    %43 = arith.mulf %42, %42 : vector<8x32xf32>
    %cst_34 = arith.constant dense<0.000000e+00> : vector<8xf32>
    %44 = vector.multi_reduction <add>, %43, %cst_34 [1] : vector<8x32xf32> to vector<8xf32>
    %45 = vector.shape_cast %44 : vector<8xf32> to vector<8x1xf32>
    %cst_35 = arith.constant 3.200000e+01 : f32
    %46 = vector.broadcast %cst_35 : f32 to vector<8x1xf32>
    %47 = arith.divf %45, %46 : vector<8x1xf32>
    %cst_36 = arith.constant 9.99999974E-6 : f32
    %48 = vector.broadcast %cst_36 : f32 to vector<8x1xf32>
    %49 = arith.addf %47, %48 : vector<8x1xf32>
    %50 = math.rsqrt %49 : vector<8x1xf32>
    %51 = vector.broadcast %50 : vector<8x1xf32> to vector<8x32xf32>
    %52 = arith.mulf %42, %51 : vector<8x32xf32>
    %c0_37 = arith.constant 0 : index
    %c0_38 = arith.constant 0 : index
    %53 = vector.load %arg5[%c0_37, %c0_38] : memref<1x32xf32, #tpu.memory_space<vmem>>, vector<1x32xf32>
    %54 = vector.broadcast %53 : vector<1x32xf32> to vector<8x32xf32>
    %55 = arith.mulf %52, %54 : vector<8x32xf32>
    %c0_39 = arith.constant 0 : index
    %c0_40 = arith.constant 0 : index
    %56 = vector.load %arg6[%c0_39, %c0_40] : memref<1x32xf32, #tpu.memory_space<vmem>>, vector<1x32xf32>
    %57 = vector.broadcast %56 : vector<1x32xf32> to vector<8x32xf32>
    %58 = arith.addf %55, %57 : vector<8x32xf32>
    %c0_41 = arith.constant 0 : index
    %c0_42 = arith.constant 0 : index
    %c0_43 = arith.constant 0 : index
    %59 = vector.load %arg7[%c0_41, %c0_42, %c0_43] : memref<1x8x32xf32, #tpu.memory_space<vmem>>, vector<1x8x32xf32>
    %60 = vector.shape_cast %59 : vector<1x8x32xf32> to vector<8x32xf32>
    %61 = vector.shape_cast %58 : vector<8x32xf32> to vector<1x8x32xf32>
    tpu.vector_store %arg7[%c0_41, %c0_42, %c0_43], %61 {strides = array<i32>} : memref<1x8x32xf32, #tpu.memory_space<vmem>>, vector<1x8x32xf32>,
    return
  }
  func.func @transform_0(%arg0: i32) -> (i32, i32, i32, i32) {
    %c0_i32 = arith.constant 0 : i32
    %c0_i32_0 = arith.constant 0 : i32
    %c0_i32_1 = arith.constant 0 : i32
    %c0_i32_2 = arith.constant 0 : i32
    return %arg0, %c0_i32, %c0_i32_0, %c0_i32_1 : i32, i32, i32, i32
  }
  func.func @transform_1(%arg0: i32) -> (i32, i32, i32) {
    %c0_i32 = arith.constant 0 : i32
    %c0_i32_0 = arith.constant 0 : i32
    %c0_i32_1 = arith.constant 0 : i32
    return %arg0, %c0_i32, %c0_i32_0 : i32, i32, i32
  }
  func.func @transform_2(%arg0: i32) -> (i32, i32, i32) {
    %c0_i32 = arith.constant 0 : i32
    %c0_i32_0 = arith.constant 0 : i32
    %c0_i32_1 = arith.constant 0 : i32
    %c0_i32_2 = arith.constant 0 : i32
    return %c0_i32, %c0_i32_0, %c0_i32_1 : i32, i32, i32
  }
  func.func @transform_3(%arg0: i32) -> (i32, i32) {
    %c0_i32 = arith.constant 0 : i32
    %c0_i32_0 = arith.constant 0 : i32
    %c0_i32_1 = arith.constant 0 : i32
    return %c0_i32, %c0_i32_0 : i32, i32
  }
  func.func @transform_4(%arg0: i32) -> (i32, i32) {
    %c0_i32 = arith.constant 0 : i32
    %c0_i32_0 = arith.constant 0 : i32
    %c0_i32_1 = arith.constant 0 : i32
    return %c0_i32, %c0_i32_0 : i32, i32
  }
  func.func @transform_5(%arg0: i32) -> (i32, i32) {
    %c0_i32 = arith.constant 0 : i32
    %c0_i32_0 = arith.constant 0 : i32
    %c0_i32_1 = arith.constant 0 : i32
    return %c0_i32, %c0_i32_0 : i32, i32
  }
  func.func @transform_6(%arg0: i32) -> (i32, i32, i32) {
    %c0_i32 = arith.constant 0 : i32
    %c0_i32_0 = arith.constant 0 : i32
    %c0_i32_1 = arith.constant 0 : i32
    return %arg0, %c0_i32, %c0_i32_0 : i32, i32, i32
  }
}

module attributes {stable_mosaic.version = 11 : i64} {
  func.func @_linear_kernel(%arg0: i32, %arg1: memref<16x32xf32, #tpu.memory_space<vmem>>, %arg2: memref<32x32xf32, #tpu.memory_space<vmem>>, %arg3: memref<1x32xf32, #tpu.memory_space<vmem>>, %arg4: memref<16x32xf32, #tpu.memory_space<vmem>>) attributes {dimension_semantics = [#tpu.dimension_semantics<parallel>], iteration_bounds = array<i64: 1>, scalar_prefetch = 0 : i64, scratch_operands = 0 : i64, tpu.core_type = #tpu.core_type<tc>, window_params = [{transform_indices = @transform_0, window_bounds = array<i64: 16, 32>}, {pipeline_mode = #tpu.pipeline_mode<synchronous>, transform_indices = @transform_1, window_bounds = array<i64: 32, 32>}, {pipeline_mode = #tpu.pipeline_mode<synchronous>, transform_indices = @transform_2, window_bounds = array<i64: 1, 32>}, {transform_indices = @transform_3, window_bounds = array<i64: 16, 32>}]} {
    %c0 = arith.constant 0 : index
    %c0_0 = arith.constant 0 : index
    %0 = vector.load %arg1[%c0, %c0_0] : memref<16x32xf32, #tpu.memory_space<vmem>>, vector<16x32xf32>
    %1 = arith.truncf %0 : vector<16x32xf32> to vector<16x32xbf16>
    %c0_1 = arith.constant 0 : index
    %c0_2 = arith.constant 0 : index
    %2 = vector.load %arg2[%c0_1, %c0_2] : memref<32x32xf32, #tpu.memory_space<vmem>>, vector<32x32xf32>
    %3 = arith.truncf %2 : vector<32x32xf32> to vector<32x32xbf16>
    %cst = arith.constant dense<0.000000e+00> : vector<16x32xf32>
    %4 = tpu.matmul %1, %3, %cst {dimension_numbers = #tpu.dot_dimension_numbers<[1], [0], [0], [1], [0, 0, 1, 1], [], []>} : vector<16x32xbf16>, vector<32x32xbf16>, vector<16x32xf32> -> vector<16x32xf32>
    %c0_3 = arith.constant 0 : index
    %c0_4 = arith.constant 0 : index
    %5 = vector.load %arg3[%c0_3, %c0_4] : memref<1x32xf32, #tpu.memory_space<vmem>>, vector<1x32xf32>
    %6 = vector.broadcast %5 : vector<1x32xf32> to vector<16x32xf32>
    %7 = arith.addf %4, %6 : vector<16x32xf32>
    %c0_5 = arith.constant 0 : index
    %c0_6 = arith.constant 0 : index
    %8 = vector.load %arg4[%c0_5, %c0_6] : memref<16x32xf32, #tpu.memory_space<vmem>>, vector<16x32xf32>
    tpu.vector_store %arg4[%c0_5, %c0_6], %7 {strides = array<i32>} : memref<16x32xf32, #tpu.memory_space<vmem>>, vector<16x32xf32>,
    return
  }
  func.func @transform_0(%arg0: i32) -> (i32, i32) {
    %c0_i32 = arith.constant 0 : i32
    %c0_i32_0 = arith.constant 0 : i32
    return %arg0, %c0_i32 : i32, i32
  }
  func.func @transform_1(%arg0: i32) -> (i32, i32) {
    %c0_i32 = arith.constant 0 : i32
    %c0_i32_0 = arith.constant 0 : i32
    %c0_i32_1 = arith.constant 0 : i32
    return %c0_i32, %c0_i32_0 : i32, i32
  }
  func.func @transform_2(%arg0: i32) -> (i32, i32) {
    %c0_i32 = arith.constant 0 : i32
    %c0_i32_0 = arith.constant 0 : i32
    %c0_i32_1 = arith.constant 0 : i32
    return %c0_i32, %c0_i32_0 : i32, i32
  }
  func.func @transform_3(%arg0: i32) -> (i32, i32) {
    %c0_i32 = arith.constant 0 : i32
    %c0_i32_0 = arith.constant 0 : i32
    return %arg0, %c0_i32 : i32, i32
  }
}

module attributes {stable_mosaic.version = 11 : i64} {
  func.func @_ffn_add_ln_kernel(%arg0: i32, %arg1: memref<16x32xf32, #tpu.memory_space<vmem>>, %arg2: memref<32x64xf32, #tpu.memory_space<vmem>>, %arg3: memref<1x64xf32, #tpu.memory_space<vmem>>, %arg4: memref<64x32xf32, #tpu.memory_space<vmem>>, %arg5: memref<1x32xf32, #tpu.memory_space<vmem>>, %arg6: memref<1x32xf32, #tpu.memory_space<vmem>>, %arg7: memref<1x32xf32, #tpu.memory_space<vmem>>, %arg8: memref<16x32xf32, #tpu.memory_space<vmem>>) attributes {dimension_semantics = [#tpu.dimension_semantics<parallel>], iteration_bounds = array<i64: 1>, scalar_prefetch = 0 : i64, scratch_operands = 0 : i64, tpu.core_type = #tpu.core_type<tc>, window_params = [{transform_indices = @transform_0, window_bounds = array<i64: 16, 32>}, {pipeline_mode = #tpu.pipeline_mode<synchronous>, transform_indices = @transform_1, window_bounds = array<i64: 32, 64>}, {pipeline_mode = #tpu.pipeline_mode<synchronous>, transform_indices = @transform_2, window_bounds = array<i64: 1, 64>}, {pipeline_mode = #tpu.pipeline_mode<synchronous>, transform_indices = @transform_3, window_bounds = array<i64: 64, 32>}, {pipeline_mode = #tpu.pipeline_mode<synchronous>, transform_indices = @transform_4, window_bounds = array<i64: 1, 32>}, {pipeline_mode = #tpu.pipeline_mode<synchronous>, transform_indices = @transform_5, window_bounds = array<i64: 1, 32>}, {pipeline_mode = #tpu.pipeline_mode<synchronous>, transform_indices = @transform_6, window_bounds = array<i64: 1, 32>}, {transform_indices = @transform_7, window_bounds = array<i64: 16, 32>}]} {
    %c0 = arith.constant 0 : index
    %c0_0 = arith.constant 0 : index
    %0 = vector.load %arg1[%c0, %c0_0] : memref<16x32xf32, #tpu.memory_space<vmem>>, vector<16x32xf32>
    %1 = arith.truncf %0 : vector<16x32xf32> to vector<16x32xbf16>
    %c0_1 = arith.constant 0 : index
    %c0_2 = arith.constant 0 : index
    %2 = vector.load %arg2[%c0_1, %c0_2] : memref<32x64xf32, #tpu.memory_space<vmem>>, vector<32x64xf32>
    %3 = arith.truncf %2 : vector<32x64xf32> to vector<32x64xbf16>
    %cst = arith.constant dense<0.000000e+00> : vector<16x64xf32>
    %4 = tpu.matmul %1, %3, %cst {dimension_numbers = #tpu.dot_dimension_numbers<[1], [0], [0], [1], [0, 0, 1, 1], [], []>} : vector<16x32xbf16>, vector<32x64xbf16>, vector<16x64xf32> -> vector<16x64xf32>
    %c0_3 = arith.constant 0 : index
    %c0_4 = arith.constant 0 : index
    %5 = vector.load %arg3[%c0_3, %c0_4] : memref<1x64xf32, #tpu.memory_space<vmem>>, vector<1x64xf32>
    %6 = vector.broadcast %5 : vector<1x64xf32> to vector<16x64xf32>
    %7 = arith.addf %4, %6 : vector<16x64xf32>
    %cst_5 = arith.constant 0.000000e+00 : f32
    %8 = vector.broadcast %cst_5 : f32 to vector<16x64xf32>
    %9 = arith.maximumf %7, %8 : vector<16x64xf32>
    %10 = arith.truncf %9 : vector<16x64xf32> to vector<16x64xbf16>
    %c0_6 = arith.constant 0 : index
    %c0_7 = arith.constant 0 : index
    %11 = vector.load %arg4[%c0_6, %c0_7] : memref<64x32xf32, #tpu.memory_space<vmem>>, vector<64x32xf32>
    %12 = arith.truncf %11 : vector<64x32xf32> to vector<64x32xbf16>
    %cst_8 = arith.constant dense<0.000000e+00> : vector<16x32xf32>
    %13 = tpu.matmul %10, %12, %cst_8 {dimension_numbers = #tpu.dot_dimension_numbers<[1], [0], [0], [1], [0, 0, 1, 1], [], []>} : vector<16x64xbf16>, vector<64x32xbf16>, vector<16x32xf32> -> vector<16x32xf32>
    %c0_9 = arith.constant 0 : index
    %c0_10 = arith.constant 0 : index
    %14 = vector.load %arg5[%c0_9, %c0_10] : memref<1x32xf32, #tpu.memory_space<vmem>>, vector<1x32xf32>
    %15 = vector.broadcast %14 : vector<1x32xf32> to vector<16x32xf32>
    %16 = arith.addf %13, %15 : vector<16x32xf32>
    %17 = arith.addf %0, %16 : vector<16x32xf32>
    %cst_11 = arith.constant dense<0.000000e+00> : vector<16xf32>
    %18 = vector.multi_reduction <add>, %17, %cst_11 [1] : vector<16x32xf32> to vector<16xf32>
    %19 = vector.shape_cast %18 : vector<16xf32> to vector<16x1xf32>
    %cst_12 = arith.constant 3.200000e+01 : f32
    %20 = vector.broadcast %cst_12 : f32 to vector<16x1xf32>
    %21 = arith.divf %19, %20 : vector<16x1xf32>
    %22 = vector.broadcast %21 : vector<16x1xf32> to vector<16x32xf32>
    %23 = arith.subf %17, %22 : vector<16x32xf32>
    %24 = arith.mulf %23, %23 : vector<16x32xf32>
    %cst_13 = arith.constant dense<0.000000e+00> : vector<16xf32>
    %25 = vector.multi_reduction <add>, %24, %cst_13 [1] : vector<16x32xf32> to vector<16xf32>
    %26 = vector.shape_cast %25 : vector<16xf32> to vector<16x1xf32>
    %cst_14 = arith.constant 3.200000e+01 : f32
    %27 = vector.broadcast %cst_14 : f32 to vector<16x1xf32>
    %28 = arith.divf %26, %27 : vector<16x1xf32>
    %cst_15 = arith.constant 9.99999974E-6 : f32
    %29 = vector.broadcast %cst_15 : f32 to vector<16x1xf32>
    %30 = arith.addf %28, %29 : vector<16x1xf32>
    %31 = math.rsqrt %30 : vector<16x1xf32>
    %32 = vector.broadcast %31 : vector<16x1xf32> to vector<16x32xf32>
    %33 = arith.mulf %23, %32 : vector<16x32xf32>
    %c0_16 = arith.constant 0 : index
    %c0_17 = arith.constant 0 : index
    %34 = vector.load %arg6[%c0_16, %c0_17] : memref<1x32xf32, #tpu.memory_space<vmem>>, vector<1x32xf32>
    %35 = vector.broadcast %34 : vector<1x32xf32> to vector<16x32xf32>
    %36 = arith.mulf %33, %35 : vector<16x32xf32>
    %c0_18 = arith.constant 0 : index
    %c0_19 = arith.constant 0 : index
    %37 = vector.load %arg7[%c0_18, %c0_19] : memref<1x32xf32, #tpu.memory_space<vmem>>, vector<1x32xf32>
    %38 = vector.broadcast %37 : vector<1x32xf32> to vector<16x32xf32>
    %39 = arith.addf %36, %38 : vector<16x32xf32>
    %c0_20 = arith.constant 0 : index
    %c0_21 = arith.constant 0 : index
    %40 = vector.load %arg8[%c0_20, %c0_21] : memref<16x32xf32, #tpu.memory_space<vmem>>, vector<16x32xf32>
    tpu.vector_store %arg8[%c0_20, %c0_21], %39 {strides = array<i32>} : memref<16x32xf32, #tpu.memory_space<vmem>>, vector<16x32xf32>,
    return
  }
  func.func @transform_0(%arg0: i32) -> (i32, i32) {
    %c0_i32 = arith.constant 0 : i32
    %c0_i32_0 = arith.constant 0 : i32
    return %arg0, %c0_i32 : i32, i32
  }
  func.func @transform_1(%arg0: i32) -> (i32, i32) {
    %c0_i32 = arith.constant 0 : i32
    %c0_i32_0 = arith.constant 0 : i32
    %c0_i32_1 = arith.constant 0 : i32
    return %c0_i32, %c0_i32_0 : i32, i32
  }
  func.func @transform_2(%arg0: i32) -> (i32, i32) {
    %c0_i32 = arith.constant 0 : i32
    %c0_i32_0 = arith.constant 0 : i32
    %c0_i32_1 = arith.constant 0 : i32
    return %c0_i32, %c0_i32_0 : i32, i32
  }
  func.func @transform_3(%arg0: i32) -> (i32, i32) {
    %c0_i32 = arith.constant 0 : i32
    %c0_i32_0 = arith.constant 0 : i32
    %c0_i32_1 = arith.constant 0 : i32
    return %c0_i32, %c0_i32_0 : i32, i32
  }
  func.func @transform_4(%arg0: i32) -> (i32, i32) {
    %c0_i32 = arith.constant 0 : i32
    %c0_i32_0 = arith.constant 0 : i32
    %c0_i32_1 = arith.constant 0 : i32
    return %c0_i32, %c0_i32_0 : i32, i32
  }
  func.func @transform_5(%arg0: i32) -> (i32, i32) {
    %c0_i32 = arith.constant 0 : i32
    %c0_i32_0 = arith.constant 0 : i32
    %c0_i32_1 = arith.constant 0 : i32
    return %c0_i32, %c0_i32_0 : i32, i32
  }
  func.func @transform_6(%arg0: i32) -> (i32, i32) {
    %c0_i32 = arith.constant 0 : i32
    %c0_i32_0 = arith.constant 0 : i32
    %c0_i32_1 = arith.constant 0 : i32
    return %c0_i32, %c0_i32_0 : i32, i32
  }
  func.func @transform_7(%arg0: i32) -> (i32, i32) {
    %c0_i32 = arith.constant 0 : i32
    %c0_i32_0 = arith.constant 0 : i32
    return %arg0, %c0_i32 : i32, i32
  }
}

module attributes {stable_mosaic.version = 11 : i64} {
  func.func @_linear_kernel(%arg0: i32, %arg1: memref<16x32xf32, #tpu.memory_space<vmem>>, %arg2: memref<32x64xf32, #tpu.memory_space<vmem>>, %arg3: memref<1x64xf32, #tpu.memory_space<vmem>>, %arg4: memref<16x64xf32, #tpu.memory_space<vmem>>) attributes {dimension_semantics = [#tpu.dimension_semantics<parallel>], iteration_bounds = array<i64: 1>, scalar_prefetch = 0 : i64, scratch_operands = 0 : i64, tpu.core_type = #tpu.core_type<tc>, window_params = [{transform_indices = @transform_0, window_bounds = array<i64: 16, 32>}, {pipeline_mode = #tpu.pipeline_mode<synchronous>, transform_indices = @transform_1, window_bounds = array<i64: 32, 64>}, {pipeline_mode = #tpu.pipeline_mode<synchronous>, transform_indices = @transform_2, window_bounds = array<i64: 1, 64>}, {transform_indices = @transform_3, window_bounds = array<i64: 16, 64>}]} {
    %c0 = arith.constant 0 : index
    %c0_0 = arith.constant 0 : index
    %0 = vector.load %arg1[%c0, %c0_0] : memref<16x32xf32, #tpu.memory_space<vmem>>, vector<16x32xf32>
    %1 = arith.truncf %0 : vector<16x32xf32> to vector<16x32xbf16>
    %c0_1 = arith.constant 0 : index
    %c0_2 = arith.constant 0 : index
    %2 = vector.load %arg2[%c0_1, %c0_2] : memref<32x64xf32, #tpu.memory_space<vmem>>, vector<32x64xf32>
    %3 = arith.truncf %2 : vector<32x64xf32> to vector<32x64xbf16>
    %cst = arith.constant dense<0.000000e+00> : vector<16x64xf32>
    %4 = tpu.matmul %1, %3, %cst {dimension_numbers = #tpu.dot_dimension_numbers<[1], [0], [0], [1], [0, 0, 1, 1], [], []>} : vector<16x32xbf16>, vector<32x64xbf16>, vector<16x64xf32> -> vector<16x64xf32>
    %c0_3 = arith.constant 0 : index
    %c0_4 = arith.constant 0 : index
    %5 = vector.load %arg3[%c0_3, %c0_4] : memref<1x64xf32, #tpu.memory_space<vmem>>, vector<1x64xf32>
    %6 = vector.broadcast %5 : vector<1x64xf32> to vector<16x64xf32>
    %7 = arith.addf %4, %6 : vector<16x64xf32>
    %c0_5 = arith.constant 0 : index
    %c0_6 = arith.constant 0 : index
    %8 = vector.load %arg4[%c0_5, %c0_6] : memref<16x64xf32, #tpu.memory_space<vmem>>, vector<16x64xf32>
    tpu.vector_store %arg4[%c0_5, %c0_6], %7 {strides = array<i32>} : memref<16x64xf32, #tpu.memory_space<vmem>>, vector<16x64xf32>,
    return
  }
  func.func @transform_0(%arg0: i32) -> (i32, i32) {
    %c0_i32 = arith.constant 0 : i32
    %c0_i32_0 = arith.constant 0 : i32
    return %arg0, %c0_i32 : i32, i32
  }
  func.func @transform_1(%arg0: i32) -> (i32, i32) {
    %c0_i32 = arith.constant 0 : i32
    %c0_i32_0 = arith.constant 0 : i32
    %c0_i32_1 = arith.constant 0 : i32
    return %c0_i32, %c0_i32_0 : i32, i32
  }
  func.func @transform_2(%arg0: i32) -> (i32, i32) {
    %c0_i32 = arith.constant 0 : i32
    %c0_i32_0 = arith.constant 0 : i32
    %c0_i32_1 = arith.constant 0 : i32
    return %c0_i32, %c0_i32_0 : i32, i32
  }
  func.func @transform_3(%arg0: i32) -> (i32, i32) {
    %c0_i32 = arith.constant 0 : i32
    %c0_i32_0 = arith.constant 0 : i32
    return %arg0, %c0_i32 : i32, i32
  }
}

module attributes {stable_mosaic.version = 11 : i64} {
  func.func @_linear_logsoftmax_kernel(%arg0: i32, %arg1: memref<16x32xf32, #tpu.memory_space<vmem>>, %arg2: memref<32x13xf32, #tpu.memory_space<vmem>>, %arg3: memref<1x13xf32, #tpu.memory_space<vmem>>, %arg4: memref<16x13xf32, #tpu.memory_space<vmem>>) attributes {dimension_semantics = [#tpu.dimension_semantics<parallel>], iteration_bounds = array<i64: 1>, scalar_prefetch = 0 : i64, scratch_operands = 0 : i64, tpu.core_type = #tpu.core_type<tc>, window_params = [{transform_indices = @transform_0, window_bounds = array<i64: 16, 32>}, {pipeline_mode = #tpu.pipeline_mode<synchronous>, transform_indices = @transform_1, window_bounds = array<i64: 32, 13>}, {pipeline_mode = #tpu.pipeline_mode<synchronous>, transform_indices = @transform_2, window_bounds = array<i64: 1, 13>}, {transform_indices = @transform_3, window_bounds = array<i64: 16, 13>}]} {
    %c0 = arith.constant 0 : index
    %c0_0 = arith.constant 0 : index
    %0 = vector.load %arg1[%c0, %c0_0] : memref<16x32xf32, #tpu.memory_space<vmem>>, vector<16x32xf32>
    %1 = arith.truncf %0 : vector<16x32xf32> to vector<16x32xbf16>
    %c0_1 = arith.constant 0 : index
    %c0_2 = arith.constant 0 : index
    %2 = vector.load %arg2[%c0_1, %c0_2] : memref<32x13xf32, #tpu.memory_space<vmem>>, vector<32x13xf32>
    %3 = arith.truncf %2 : vector<32x13xf32> to vector<32x13xbf16>
    %cst = arith.constant dense<0.000000e+00> : vector<16x13xf32>
    %4 = tpu.matmul %1, %3, %cst {dimension_numbers = #tpu.dot_dimension_numbers<[1], [0], [0], [1], [0, 0, 1, 1], [], []>} : vector<16x32xbf16>, vector<32x13xbf16>, vector<16x13xf32> -> vector<16x13xf32>
    %c0_3 = arith.constant 0 : index
    %c0_4 = arith.constant 0 : index
    %5 = vector.load %arg3[%c0_3, %c0_4] : memref<1x13xf32, #tpu.memory_space<vmem>>, vector<1x13xf32>
    %6 = vector.broadcast %5 : vector<1x13xf32> to vector<16x13xf32>
    %7 = arith.addf %4, %6 : vector<16x13xf32>
    %cst_5 = arith.constant dense<0xFF800000> : vector<16xf32>
    %8 = vector.multi_reduction <maximumf>, %7, %cst_5 [1] : vector<16x13xf32> to vector<16xf32>
    %9 = vector.shape_cast %8 : vector<16xf32> to vector<16x1xf32>
    %10 = vector.broadcast %9 : vector<16x1xf32> to vector<16x13xf32>
    %11 = arith.subf %7, %10 : vector<16x13xf32>
    %12 = math.exp %11 : vector<16x13xf32>
    %cst_6 = arith.constant dense<0.000000e+00> : vector<16xf32>
    %13 = vector.multi_reduction <add>, %12, %cst_6 [1] : vector<16x13xf32> to vector<16xf32>
    %14 = vector.shape_cast %13 : vector<16xf32> to vector<16x1xf32>
    %15 = math.log %14 : vector<16x1xf32>
    %16 = vector.broadcast %15 : vector<16x1xf32> to vector<16x13xf32>
    %17 = arith.subf %11, %16 : vector<16x13xf32>
    %c0_7 = arith.constant 0 : index
    %c0_8 = arith.constant 0 : index
    %18 = vector.load %arg4[%c0_7, %c0_8] : memref<16x13xf32, #tpu.memory_space<vmem>>, vector<16x13xf32>
    tpu.vector_store %arg4[%c0_7, %c0_8], %17 {strides = array<i32>} : memref<16x13xf32, #tpu.memory_space<vmem>>, vector<16x13xf32>,
    return
  }
  func.func @transform_0(%arg0: i32) -> (i32, i32) {
    %c0_i32 = arith.constant 0 : i32
    %c0_i32_0 = arith.constant 0 : i32
    return %arg0, %c0_i32 : i32, i32
  }
  func.func @transform_1(%arg0: i32) -> (i32, i32) {
    %c0_i32 = arith.constant 0 : i32
    %c0_i32_0 = arith.constant 0 : i32
    %c0_i32_1 = arith.constant 0 : i32
    return %c0_i32, %c0_i32_0 : i32, i32
  }
  func.func @transform_2(%arg0: i32) -> (i32, i32) {
    %c0_i32 = arith.constant 0 : i32
    %c0_i32_0 = arith.constant 0 : i32
    %c0_i32_1 = arith.constant 0 : i32
    return %c0_i32, %c0_i32_0 : i32, i32
  }
  func.func @transform_3(%arg0: i32) -> (i32, i32) {
    %c0_i32 = arith.constant 0 : i32
    %c0_i32_0 = arith.constant 0 : i32
    return %arg0, %c0_i32 : i32, i32
  }
}

</mosaic_0001>

<llo_original>
// kernel: transformer_forward.33
$region0: #{transformer_forward.33}
  #allocation0 [shape = 'u32[]', space=smem, size = 0x4, offset = 0x4, fixed_abs, tag = 'smem constant byte address 0x4 - core index']
  #allocation1 [shape = 'u32[144,128]{1,0:T(1,128)}', space=vmem, size = 0x12000, scoped, tag = 'internal scratch']
  %s0 = inlined_call_operand.vmem [shape: f32[16,32], index: 0, kind: input, shape index: {}]
  %s1 = inlined_call_operand.vmem [shape: f32[32,96], index: 1, kind: input, shape index: {}]
  %s2 = inlined_call_operand.vmem [shape: f32[1,96], index: 2, kind: input, shape index: {}]
  %s3 = inlined_call_operand.vmem [shape: f32[16,96], index: 3, kind: output, shape index: {}]
  %s4 = sld [smem:[#allocation0]]
  $region22: #{transformer_forward.33} parent=0
    _
  %s6 = ssub.s32 1, %s4
  %s7 = scalar_select 0, %s6, %s4
  // Predicated region
  $region2: #{transformer_forward.33} parent=0 // pred_check
    _
  $region3: #{transformer_forward.33} parent=0 // pred_check_branch
    %9 = sbr.rel (0) target = $region5
  $region4: #{transformer_forward.33} parent=0 // pred_region
    _
  $region5: #{transformer_forward.33} parent=0 // pred_fallthru
    _
  // Predicated region
  $region6: #{transformer_forward.33} parent=0 // pred_check
    _
  $region7: #{transformer_forward.33} parent=0 // pred_check_branch
    %11 = sbr.rel (0) target = $region9
  $region8: #{transformer_forward.33} parent=0 // pred_region
    _
  $region9: #{transformer_forward.33} parent=0 // pred_fallthru
    _
  // Predicated region
  $region10: #{transformer_forward.33} parent=0 // pred_check
    _
  $region11: #{transformer_forward.33} parent=0 // pred_check_branch
    %13 = sbr.rel (0) target = $region13
  $region12: #{transformer_forward.33} parent=0 // pred_region
    _
  $region13: #{transformer_forward.33} parent=0 // pred_fallthru
    _
  %v15 = vld [vmem:[%s0] sm:$0xff]
  %v16 = vld [vmem:[%s0 + $0x8] sm:$0xff]
  %v17 = vpack.c.bf16 %v16, %v15
  %v18 = vld [vmem:[%s1] sm:$0xff]
  %v19 = vld [vmem:[%s1 + $0x8] sm:$0xff]
  %v20 = vld [vmem:[%s1 + $0x10] sm:$0xff]
  %v21 = vld [vmem:[%s1 + $0x18] sm:$0xff]
  %v22 = vpack.c.bf16 %v19, %v18
  %v23 = vpack.c.bf16 %v21, %v20
  %v24 = vld [vmem:[%s2] sm:$0x1]
  %v26 = vlaneseq
  %v27 = vshrl.u32 %v26, 7
  %v28 = vsub.s32 0, %v27
  %v29 = vrot.slane %v24, %v28
  %vm31 = vcmask 261120
  %v33 = vsel %vm31, %v17, 0
  %35 = vmatprep.subr.bf16.mxu0 0
  %36 = vmatpush1.bf16.msra.mxu0 %v22
  %37 = vmatprep.subr.bf16.mxu0 0
  %38 = vmatpush1.bf16.msra.mxu0 %v23
  %39 = vmatprep.subr.bf16.mxu0 0
  %40 = vmatpush1.bf16.msra.mxu0 0
  %41 = vmatprep.subr.bf16.mxu0 0
  %42 = vmatpush1.bf16.msra.mxu0 0
  %43 = vmatprep.subr.bf16.mxu0 0
  %44 = vmatpush1.bf16.msra.mxu0 0
  %45 = vmatprep.subr.bf16.mxu0 0
  %46 = vmatpush1.bf16.msra.mxu0 0
  %47 = vmatprep.subr.bf16.mxu0 0
  %48 = vmatpush1.bf16.msra.mxu0 0
  %49 = vmatprep.subr.bf16.mxu0 0
  %50 = vmatpush1.bf16.msra.mxu0 0
  %51 = vmatprep.subr.bf16.mxu0 0
  %52 = vmatpush1.bf16.msra.mxu0 0
  %53 = vmatprep.subr.bf16.mxu0 0
  %54 = vmatpush1.bf16.msra.mxu0 0
  %55 = vmatprep.subr.bf16.mxu0 0
  %56 = vmatpush1.bf16.msra.mxu0 0
  %57 = vmatprep.subr.bf16.mxu0 0
  %58 = vmatpush1.bf16.msra.mxu0 0
  %59 = vmatprep.subr.bf16.mxu0 0
  %60 = vmatpush1.bf16.msra.mxu0 0
  %61 = vmatprep.subr.bf16.mxu0 0
  %62 = vmatpush1.bf16.msra.mxu0 0
  %63 = vmatprep.subr.bf16.mxu0 0
  %64 = vmatpush1.bf16.msra.mxu0 0
  %65 = vmatprep.subr.bf16.mxu0 0
  %66 = vmatpush1.bf16.msra.mxu0 0
  %67 = vmatprep.mubr.bf16.mxu0 0
  %68 = vmatmul.mubr.bf16.gmra.mrb[0].mxu0 %v33
  %v69 = vpop.f32.mrb[0].mxu0
  %v70 = vadd.f32 %v29, %v69
  %v71 = vpop.f32.mrb[0].mxu0
  %v72 = vpop.f32.mrb[0].mxu0
  %v73 = vadd.f32 %v29, %v72
  %v74 = vpop.f32.mrb[0].mxu0
  %75 = vdwg.mxu0
  %vm76 = vcmask 785408
  %77 = vst.msk [vmem:[%s3] sm:$0xff] %vm76, %v70
  %78 = vst.msk [vmem:[%s3 + $0x8] sm:$0xff] %vm76, %v73
  // Predicated region
  $region14: #{transformer_forward.33} parent=0 // pred_check
    _
  $region15: #{transformer_forward.33} parent=0 // pred_check_branch
    %80 = sbr.rel (0) target = $region17
  $region16: #{transformer_forward.33} parent=0 // pred_region
    _
  $region17: #{transformer_forward.33} parent=0 // pred_fallthru
    _
  // Predicated region
  $region18: #{transformer_forward.33} parent=0 // pred_check
    _
  $region19: #{transformer_forward.33} parent=0 // pred_check_branch
    %82 = sbr.rel (0) target = $region21
  $region20: #{transformer_forward.33} parent=0 // pred_region
    _
  $region21: #{transformer_forward.33} parent=0 // pred_fallthru
    _

// kernel: transformer_forward.34
$region0: #{transformer_forward.34}
  #allocation0 [shape = 'u32[]', space=smem, size = 0x4, offset = 0x4, fixed_abs, tag = 'smem constant byte address 0x4 - core index']
  #allocation1 [shape = 'u32[144,128]{1,0:T(1,128)}', space=vmem, size = 0x12000, scoped, tag = 'internal scratch']
  %s0 = inlined_call_operand.vmem [shape: f32[2,4,8,8], index: 0, kind: input, shape index: {}]
  %s1 = inlined_call_operand.vmem [shape: f32[2,4,8,8], index: 1, kind: input, shape index: {}]
  %s2 = inlined_call_operand.vmem [shape: f32[2,4,8,8], index: 2, kind: input, shape index: {}]
  %s3 = inlined_call_operand.vmem [shape: f32[2,8,8], index: 3, kind: input, shape index: {}]
  %s4 = inlined_call_operand.vmem [shape: f32[2,4,8,8], index: 4, kind: output, shape index: {}]
  %s5 = sld [smem:[#allocation0]]
  $region49: #{transformer_forward.34} parent=0
    _
  %s7 = ssub.s32 1, %s5
  %s8 = scalar_select 0, %s7, %s5
  loop: start=0, step=1, limit=10
  $region2: #{transformer_forward.34} parent=0 // loop_pre_header
    _
  $region3: #{transformer_forward.34} parent=0 // loop_header
    %s10 = sphi 0, %s14
    %p11 = scmp.ge.s32.totalorder %s10, 10
    %s17 = sphi 0, %s29
    %s18 = sphi 0, %s25
    %s19 = sphi 0, %s17
    %s20 = sphi 0, %s18
    %s21 = sphi 0, %s19
    %s22 = sphi 0, %s20
    %s34 = sphi 0, %s36
    %s37 = sphi 0, %s34
    %s38 = sphi 0, %s37
    %s54 = sphi 0, %s38
    %s62 = sphi 0, %s64
    %s65 = sphi 0, %s62
    %s66 = sphi 0, %s65
    %s82 = sphi 0, %s66
    %s90 = sphi 0, %s92
    %s93 = sphi 0, %s90
    %s94 = sphi 0, %s93
    %s110 = sphi 0, %s94
    %s116 = sphi 0, %s118
    %s119 = sphi 0, %s116
    %s120 = sphi 0, %s119
    %s136 = sphi 0, %s120
    %s144 = sphi 0, %s146
    %s147 = sphi 0, %s144
    %s148 = sphi 0, %s147
    %s164 = sphi 0, %s148
  $region4: #{transformer_forward.34} parent=0 // loop_header_branch
    %13 = sbr.rel (%p11) target = $region8
  $region5: #{transformer_forward.34} parent=0 // loop_body
    %s15 = ssub.s32 %s10, 1
    %s16 = ssub.s32 %s10, 2
    %s23 = sadd.s32 1, %s18
    %p24 = scmp.ge.s32.totalorder %s23, 4
    %s25 = scalar_select %p24, 0, %s23
    %s26 = sadd.s32 1, %s17
    %s27 = scalar_select %p24, %s26, %s17
    %p28 = scmp.ge.s32.totalorder %s27, 2
    %s29 = scalar_select %p28, 0, %s27
    %s30 = ssub.s32 %s17, %s29
    %s31 = ssub.s32 %s18, %s25
    %s32 = sor.u32 %s30, %s31
    %p33 = scmp.eq.s32.totalorder %s32, 0
    %s35 = sadd.s32 %s34, 1
    %s36 = scalar_select %p33, %s34, %s35
    %p39 = pneg %p33
    %p40 = scmp.eq.s32.totalorder %s10, 7
    %p41 = por %p39, %p40
    %p42 = scmp.ne.s32.totalorder %s34, %s37
    %p43 = scmp.eq.s32.totalorder %s10, 0
    %p44 = por %p42, %p43
    %p45 = scmp.ne.s32.totalorder %s34, %s37
    %p46 = scmp.eq.s32.totalorder %s15, 7
    %p47 = por %p45, %p46
    %p48 = scmp.ne.s32.totalorder %s37, %s38
    %p49 = scmp.eq.s32.totalorder %s15, 0
    %p50 = por %p48, %p49
    %p51 = scmp.ne.s32.totalorder %s37, %s38
    %p52 = scmp.eq.s32.totalorder %s16, 7
    %p53 = por %p51, %p52
    %p55 = scmp.ne.s32.totalorder %s38, %s54
    %p56 = scmp.eq.s32.totalorder %s16, 0
    %p57 = por %p55, %p56
    %s58 = ssub.s32 %s17, %s29
    %s59 = ssub.s32 %s18, %s25
    %s60 = sor.u32 %s58, %s59
    %p61 = scmp.eq.s32.totalorder %s60, 0
    %s63 = sadd.s32 %s62, 1
    %s64 = scalar_select %p61, %s62, %s63
    %p67 = pneg %p61
    %p68 = scmp.eq.s32.totalorder %s10, 7
    %p69 = por %p67, %p68
    %p70 = scmp.ne.s32.totalorder %s62, %s65
    %p71 = scmp.eq.s32.totalorder %s10, 0
    %p72 = por %p70, %p71
    %p73 = scmp.ne.s32.totalorder %s62, %s65
    %p74 = scmp.eq.s32.totalorder %s15, 7
    %p75 = por %p73, %p74
    %p76 = scmp.ne.s32.totalorder %s65, %s66
    %p77 = scmp.eq.s32.totalorder %s15, 0
    %p78 = por %p76, %p77
    %p79 = scmp.ne.s32.totalorder %s65, %s66
    %p80 = scmp.eq.s32.totalorder %s16, 7
    %p81 = por %p79, %p80
    %p83 = scmp.ne.s32.totalorder %s66, %s82
    %p84 = scmp.eq.s32.totalorder %s16, 0
    %p85 = por %p83, %p84
    %s86 = ssub.s32 %s17, %s29
    %s87 = ssub.s32 %s18, %s25
    %s88 = sor.u32 %s86, %s87
    %p89 = scmp.eq.s32.totalorder %s88, 0
    %s91 = sadd.s32 %s90, 1
    %s92 = scalar_select %p89, %s90, %s91
    %p95 = pneg %p89
    %p96 = scmp.eq.s32.totalorder %s10, 7
    %p97 = por %p95, %p96
    %p98 = scmp.ne.s32.totalorder %s90, %s93
    %p99 = scmp.eq.s32.totalorder %s10, 0
    %p100 = por %p98, %p99
    %p101 = scmp.ne.s32.totalorder %s90, %s93
    %p102 = scmp.eq.s32.totalorder %s15, 7
    %p103 = por %p101, %p102
    %p104 = scmp.ne.s32.totalorder %s93, %s94
    %p105 = scmp.eq.s32.totalorder %s15, 0
    %p106 = por %p104, %p105
    %p107 = scmp.ne.s32.totalorder %s93, %s94
    %p108 = scmp.eq.s32.totalorder %s16, 7
    %p109 = por %p107, %p108
    %p111 = scmp.ne.s32.totalorder %s94, %s110
    %p112 = scmp.eq.s32.totalorder %s16, 0
    %p113 = por %p111, %p112
    %s114 = ssub.s32 %s17, %s29
    %p115 = scmp.eq.s32.totalorder %s114, 0
    %s117 = sadd.s32 %s116, 1
    %s118 = scalar_select %p115, %s116, %s117
    %p121 = pneg %p115
    %p122 = scmp.eq.s32.totalorder %s10, 7
    %p123 = por %p121, %p122
    %p124 = scmp.ne.s32.totalorder %s116, %s119
    %p125 = scmp.eq.s32.totalorder %s10, 0
    %p126 = por %p124, %p125
    %p127 = scmp.ne.s32.totalorder %s116, %s119
    %p128 = scmp.eq.s32.totalorder %s15, 7
    %p129 = por %p127, %p128
    %p130 = scmp.ne.s32.totalorder %s119, %s120
    %p131 = scmp.eq.s32.totalorder %s15, 0
    %p132 = por %p130, %p131
    %p133 = scmp.ne.s32.totalorder %s119, %s120
    %p134 = scmp.eq.s32.totalorder %s16, 7
    %p135 = por %p133, %p134
    %p137 = scmp.ne.s32.totalorder %s120, %s136
    %p138 = scmp.eq.s32.totalorder %s16, 0
    %p139 = por %p137, %p138
    %s140 = ssub.s32 %s17, %s29
    %s141 = ssub.s32 %s18, %s25
    %s142 = sor.u32 %s140, %s141
    %p143 = scmp.eq.s32.totalorder %s142, 0
    %s145 = sadd.s32 %s144, 1
    %s146 = scalar_select %p143, %s144, %s145
    %p149 = pneg %p143
    %p150 = scmp.eq.s32.totalorder %s10, 7
    %p151 = por %p149, %p150
    %p152 = scmp.ne.s32.totalorder %s144, %s147
    %p153 = scmp.eq.s32.totalorder %s10, 0
    %p154 = por %p152, %p153
    %p155 = scmp.ne.s32.totalorder %s144, %s147
    %p156 = scmp.eq.s32.totalorder %s15, 7
    %p157 = por %p155, %p156
    %p158 = scmp.ne.s32.totalorder %s147, %s148
    %p159 = scmp.eq.s32.totalorder %s15, 0
    %p160 = por %p158, %p159
    %p161 = scmp.ne.s32.totalorder %s147, %s148
    %p162 = scmp.eq.s32.totalorder %s16, 7
    %p163 = por %p161, %p162
    %p165 = scmp.ne.s32.totalorder %s148, %s164
    %p166 = scmp.eq.s32.totalorder %s16, 0
    %p167 = por %p165, %p166
    %p168 = scmp.le.s32.totalorder 1, %s10
    %p169 = scmp.lt.s32.totalorder %s10, 9
    %p170 = pnand %p168, %p169
    %p171 = pneg %p170
    // Predicated region
    $region9: #{transformer_forward.34} parent=5 // pred_check
      _
    $region10: #{transformer_forward.34} parent=5 // pred_check_branch
      %173 = sbr.rel (%p170) target = $region12
    $region11: #{transformer_forward.34} parent=5 // pred_region
      %s174 = ssub.s32 %s10, 1
    $region12: #{transformer_forward.34} parent=5 // pred_fallthru
      _
    %p175 = scmp.lt.s32.totalorder %s10, 8
    // Predicated region
    $region13: #{transformer_forward.34} parent=5 // pred_check
      %p176 = pneg %p175
    $region14: #{transformer_forward.34} parent=5 // pred_check_branch
      %178 = sbr.rel (%p176) target = $region16
    $region15: #{transformer_forward.34} parent=5 // pred_region
      // Predicated region
      $region17: #{transformer_forward.34} parent=15 // pred_check
        %p179 = pneg %p44
      $region18: #{transformer_forward.34} parent=15 // pred_check_branch
        %181 = sbr.rel (%p179) target = $region20
      $region19: #{transformer_forward.34} parent=15 // pred_region
        %p182 = scmp.lt.s32.totalorder %s17, 1
        %s183 = scalar_select %p182, %s17, 1
        %p184 = scmp.lt.s32.totalorder %s18, 3
        %s185 = scalar_select %p184, %s18, 3
        %s186 = smul.addr %s183, 4
        %s187 = sadd.s32 %s185, %s186
        %s188 = smul.addr %s187, 8
        %s189 = scalar_lea.vmem %s0, %s188
      $region20: #{transformer_forward.34} parent=15 // pred_fallthru
        _
      // Predicated region
      $region21: #{transformer_forward.34} parent=15 // pred_check
        %p190 = pneg %p72
      $region22: #{transformer_forward.34} parent=15 // pred_check_branch
        %192 = sbr.rel (%p190) target = $region24
      $region23: #{transformer_forward.34} parent=15 // pred_region
        %p193 = scmp.lt.s32.totalorder %s17, 1
        %s194 = scalar_select %p193, %s17, 1
        %p195 = scmp.lt.s32.totalorder %s18, 3
        %s196 = scalar_select %p195, %s18, 3
        %s197 = smul.addr %s194, 4
        %s198 = sadd.s32 %s196, %s197
        %s199 = smul.addr %s198, 8
        %s200 = scalar_lea.vmem %s1, %s199
      $region24: #{transformer_forward.34} parent=15 // pred_fallthru
        _
      // Predicated region
      $region25: #{transformer_forward.34} parent=15 // pred_check
        %p201 = pneg %p100
      $region26: #{transformer_forward.34} parent=15 // pred_check_branch
        %203 = sbr.rel (%p201) target = $region28
      $region27: #{transformer_forward.34} parent=15 // pred_region
        %p204 = scmp.lt.s32.totalorder %s17, 1
        %s205 = scalar_select %p204, %s17, 1
        %p206 = scmp.lt.s32.totalorder %s18, 3
        %s207 = scalar_select %p206, %s18, 3
        %s208 = smul.addr %s205, 4
        %s209 = sadd.s32 %s207, %s208
        %s210 = smul.addr %s209, 8
        %s211 = scalar_lea.vmem %s2, %s210
      $region28: #{transformer_forward.34} parent=15 // pred_fallthru
        _
      // Predicated region
      $region29: #{transformer_forward.34} parent=15 // pred_check
        %p212 = pneg %p126
      $region30: #{transformer_forward.34} parent=15 // pred_check_branch
        %214 = sbr.rel (%p212) target = $region32
      $region31: #{transformer_forward.34} parent=15 // pred_region
        %p215 = scmp.lt.s32.totalorder %s17, 1
        %s216 = scalar_select %p215, %s17, 1
        %s217 = smul.addr %s216, 8
        %s218 = scalar_lea.vmem %s3, %s217
      $region32: #{transformer_forward.34} parent=15 // pred_fallthru
        _
    $region16: #{transformer_forward.34} parent=5 // pred_fallthru
      _
    %p219 = scmp.le.s32.totalorder 1, %s10
    %p220 = scmp.lt.s32.totalorder %s10, 9
    %p221 = pnand %p219, %p220
    %p222 = pneg %p221
    // Predicated region
    $region33: #{transformer_forward.34} parent=5 // pred_check
      _
    $region34: #{transformer_forward.34} parent=5 // pred_check_branch
      %224 = sbr.rel (%p221) target = $region36
    $region35: #{transformer_forward.34} parent=5 // pred_region
      %s225 = ssub.s32 %s10, 1
      %p226 = scmp.lt.s32.totalorder %s19, 1
      %s227 = scalar_select %p226, %s19, 1
      %p228 = scmp.lt.s32.totalorder %s20, 3
      %s229 = scalar_select %p228, %s20, 3
      %s230 = smul.addr %s227, 4
      %s231 = sadd.s32 %s229, %s230
      %s232 = smul.addr %s231, 8
      %s233 = scalar_lea.vmem %s0, %s232
      %p234 = pneg %p50
      %p235 = pneg %p47
      %p236 = scmp.lt.s32.totalorder %s19, 1
      %s237 = scalar_select %p236, %s19, 1
      %p238 = scmp.lt.s32.totalorder %s20, 3
      %s239 = scalar_select %p238, %s20, 3
      %s240 = smul.addr %s237, 4
      %s241 = sadd.s32 %s239, %s240
      %s242 = smul.addr %s241, 8
      %s243 = scalar_lea.vmem %s1, %s242
      %p244 = pneg %p78
      %p245 = pneg %p75
      %p246 = scmp.lt.s32.totalorder %s19, 1
      %s247 = scalar_select %p246, %s19, 1
      %p248 = scmp.lt.s32.totalorder %s20, 3
      %s249 = scalar_select %p248, %s20, 3
      %s250 = smul.addr %s247, 4
      %s251 = sadd.s32 %s249, %s250
      %s252 = smul.addr %s251, 8
      %s253 = scalar_lea.vmem %s2, %s252
      %p254 = pneg %p106
      %p255 = pneg %p103
      %p256 = scmp.lt.s32.totalorder %s19, 1
      %s257 = scalar_select %p256, %s19, 1
      %s258 = smul.addr %s257, 8
      %s259 = scalar_lea.vmem %s3, %s258
      %p260 = pneg %p132
      %p261 = pneg %p129
      %p262 = pneg %p160
      %p263 = pneg %p157
      %p264 = scmp.lt.s32.totalorder %s19, 1
      %s265 = scalar_select %p264, %s19, 1
      %p266 = scmp.lt.s32.totalorder %s20, 3
      %s267 = scalar_select %p266, %s20, 3
      %s268 = smul.addr %s265, 4
      %s269 = sadd.s32 %s267, %s268
      %s270 = smul.addr %s269, 8
      %s271 = scalar_lea.vmem %s4, %s270
      %p272 = scmp.lt.s32.totalorder %s19, 1
      %s273 = scalar_select %p272, %s19, 1
      %p274 = scmp.lt.s32.totalorder %s20, 3
      %s275 = scalar_select %p274, %s20, 3
      %s276 = smul.addr %s273, 4
      %s277 = sadd.s32 %s275, %s276
      %s278 = smul.addr %s277, 8
      %s279 = scalar_lea.vmem %s0, %s278
      %p280 = scmp.lt.s32.totalorder %s19, 1
      %s281 = scalar_select %p280, %s19, 1
      %p282 = scmp.lt.s32.totalorder %s20, 3
      %s283 = scalar_select %p282, %s20, 3
      %s284 = smul.addr %s281, 4
      %s285 = sadd.s32 %s283, %s284
      %s286 = smul.addr %s285, 8
      %s287 = scalar_lea.vmem %s1, %s286
      %p288 = scmp.lt.s32.totalorder %s19, 1
      %s289 = scalar_select %p288, %s19, 1
      %p290 = scmp.lt.s32.totalorder %s20, 3
      %s291 = scalar_select %p290, %s20, 3
      %s292 = smul.addr %s289, 4
      %s293 = sadd.s32 %s291, %s292
      %s294 = smul.addr %s293, 8
      %s295 = scalar_lea.vmem %s2, %s294
      %p296 = scmp.lt.s32.totalorder %s19, 1
      %s297 = scalar_select %p296, %s19, 1
      %s298 = smul.addr %s297, 8
      %s299 = scalar_lea.vmem %s3, %s298
      %p300 = scmp.lt.s32.totalorder %s19, 1
      %s301 = scalar_select %p300, %s19, 1
      %p302 = scmp.lt.s32.totalorder %s20, 3
      %s303 = scalar_select %p302, %s20, 3
      %s304 = smul.addr %s301, 4
      %s305 = sadd.s32 %s303, %s304
      %s306 = smul.addr %s305, 8
      %s307 = scalar_lea.vmem %s4, %s306
      %v309 = vld [vmem:[%s279] sm:$0xff]
      %v310 = vpack.c.bf16 %v309, %v309
      %v311 = vld [vmem:[%s287] sm:$0xff]
      %v312 = vpack.c.bf16 %v311, %v311
      %v313 = vld [vmem:[%s295] sm:$0xff]
      %v314 = vpack.c.bf16 %v313, %v313
      %vm315 = vcmask 64512
      %v317 = vsel %vm315, %v310, 0
      %v320 = vsel %vm315, %v312, 0
      %322 = vmatprep.subr.bf16.mxu0 0
      %323 = vmatpush1.bf16.xpose.msra.mxu0 %v320
      %324 = vmatprep.subr.bf16.mxu0 0
      %325 = vmatpush1.bf16.xpose.msra.mxu0 0
      %326 = vmatprep.subr.bf16.mxu0 0
      %327 = vmatpush1.bf16.xpose.msra.mxu0 0
      %328 = vmatprep.subr.bf16.mxu0 0
      %329 = vmatpush1.bf16.xpose.msra.mxu0 0
      %330 = vmatprep.subr.bf16.mxu0 0
      %331 = vmatpush1.bf16.xpose.msra.mxu0 0
      %332 = vmatprep.subr.bf16.mxu0 0
      %333 = vmatpush1.bf16.xpose.msra.mxu0 0
      %334 = vmatprep.subr.bf16.mxu0 0
      %335 = vmatpush1.bf16.xpose.msra.mxu0 0
      %336 = vmatprep.subr.bf16.mxu0 0
      %337 = vmatpush1.bf16.xpose.msra.mxu0 0
      %338 = vmatprep.subr.bf16.mxu0 0
      %339 = vmatpush1.bf16.xpose.msra.mxu0 0
      %340 = vmatprep.subr.bf16.mxu0 0
      %341 = vmatpush1.bf16.xpose.msra.mxu0 0
      %342 = vmatprep.subr.bf16.mxu0 0
      %343 = vmatpush1.bf16.xpose.msra.mxu0 0
      %344 = vmatprep.subr.bf16.mxu0 0
      %345 = vmatpush1.bf16.xpose.msra.mxu0 0
      %346 = vmatprep.subr.bf16.mxu0 0
      %347 = vmatpush1.bf16.xpose.msra.mxu0 0
      %348 = vmatprep.subr.bf16.mxu0 0
      %349 = vmatpush1.bf16.xpose.msra.mxu0 0
      %350 = vmatprep.subr.bf16.mxu0 0
      %351 = vmatpush1.bf16.xpose.msra.mxu0 0
      %352 = vmatprep.subr.bf16.mxu0 0
      %353 = vmatpush1.bf16.xpose.msra.mxu0 0
      %354 = vmatprep.mubr.bf16.mxu0 0
      %355 = vmatmul.mubr.bf16.gmra.mrb[0].mxu0 %v317
      %v356 = vpop.f32.mrb[0].mxu0
      %v357 = vadd.f32 0.0, %v356
      %v358 = vpop.f32.mrb[0].mxu0
      %v359 = vpop.f32.mrb[0].mxu0
      %v360 = vpop.f32.mrb[0].mxu0
      %361 = vdwg.mxu0
      %v362 = vmul.f32 %v357, 0.35355338
      %v363 = vld [vmem:[%s299] sm:$0xff]
      %vm364 = vcmp.gt.f32.partialorder %v363, 0.5
      %v365 = vsel %vm364, %v362, -1e+09
      %v366 = vsel %vm315, %v365, -inf
      %367 = vmax.xlane.f32.xlu0 %v366
      %v368 = vpop.xlane.xlu0 %367
      %v369 = vsub.f32 %v365, %v368
      %v370 = vmul.f32 %v369, 1.442695
      %v371 = vpow.pop %v370
      %v372 = vsel %vm315, %v371, 0.0
      %373 = vadd.xlane.f32.xlu0 %v372
      %v374 = vpop.xlane.xlu0 %373
      %v375 = vrcp.pop %v374
      %v376 = vmul.f32 %v371, %v375
      %v377 = vpack.c.bf16 %v376, %v376
      %v379 = vsel %vm315, %v377, 0
      %vm381 = vcmask 1043456
      %v383 = vsel %vm381, %v314, 0
      %385 = vmatprep.subr.bf16.mxu0 0
      %386 = vmatpush1.bf16.msra.mxu0 %v383
      %387 = vmatprep.subr.bf16.mxu0 0
      %388 = vmatpush1.bf16.msra.mxu0 0
      %389 = vmatprep.subr.bf16.mxu0 0
      %390 = vmatpush1.bf16.msra.mxu0 0
      %391 = vmatprep.subr.bf16.mxu0 0
      %392 = vmatpush1.bf16.msra.mxu0 0
      %393 = vmatprep.subr.bf16.mxu0 0
      %394 = vmatpush1.bf16.msra.mxu0 0
      %395 = vmatprep.subr.bf16.mxu0 0
      %396 = vmatpush1.bf16.msra.mxu0 0
      %397 = vmatprep.subr.bf16.mxu0 0
      %398 = vmatpush1.bf16.msra.mxu0 0
      %399 = vmatprep.subr.bf16.mxu0 0
      %400 = vmatpush1.bf16.msra.mxu0 0
      %401 = vmatprep.subr.bf16.mxu0 0
      %402 = vmatpush1.bf16.msra.mxu0 0
      %403 = vmatprep.subr.bf16.mxu0 0
      %404 = vmatpush1.bf16.msra.mxu0 0
      %405 = vmatprep.subr.bf16.mxu0 0
      %406 = vmatpush1.bf16.msra.mxu0 0
      %407 = vmatprep.subr.bf16.mxu0 0
      %408 = vmatpush1.bf16.msra.mxu0 0
      %409 = vmatprep.subr.bf16.mxu0 0
      %410 = vmatpush1.bf16.msra.mxu0 0
      %411 = vmatprep.subr.bf16.mxu0 0
      %412 = vmatpush1.bf16.msra.mxu0 0
      %413 = vmatprep.subr.bf16.mxu0 0
      %414 = vmatpush1.bf16.msra.mxu0 0
      %415 = vmatprep.subr.bf16.mxu0 0
      %416 = vmatpush1.bf16.msra.mxu0 0
      %417 = vmatprep.mubr.bf16.mxu0 0
      %418 = vmatmul.mubr.bf16.gmra.mrb[0].mxu0 %v379
      %v419 = vpop.f32.mrb[0].mxu0
      %v420 = vadd.f32 0.0, %v419
      %v421 = vpop.f32.mrb[0].mxu0
      %v422 = vpop.f32.mrb[0].mxu0
      %v423 = vpop.f32.mrb[0].mxu0
      %424 = vdwg.mxu0
      %425 = vst.msk [vmem:[%s307] sm:$0xff] %vm315, %v420
      %p426 = scmp.lt.s32.totalorder %s19, 1
      %s427 = scalar_select %p426, %s19, 1
      %p428 = scmp.lt.s32.totalorder %s20, 3
      %s429 = scalar_select %p428, %s20, 3
      %s430 = smul.addr %s427, 4
      %s431 = sadd.s32 %s429, %s430
      %s432 = smul.addr %s431, 8
      %s433 = scalar_lea.vmem %s4, %s432
      // Predicated region
      $region37: #{transformer_forward.34} parent=35 // pred_check
        %p434 = pneg %p157
      $region38: #{transformer_forward.34} parent=35 // pred_check_branch
        %436 = sbr.rel (%p434) target = $region40
      $region39: #{transformer_forward.34} parent=35 // pred_region
        _
      $region40: #{transformer_forward.34} parent=35 // pred_fallthru
        _
    $region36: #{transformer_forward.34} parent=5 // pred_fallthru
      _
    %p437 = scmp.le.s32.totalorder 2, %s10
    // Predicated region
    $region41: #{transformer_forward.34} parent=5 // pred_check
      %p438 = pneg %p437
    $region42: #{transformer_forward.34} parent=5 // pred_check_branch
      %440 = sbr.rel (%p438) target = $region44
    $region43: #{transformer_forward.34} parent=5 // pred_region
      %s441 = ssub.s32 %s10, 2
      // Predicated region
      $region45: #{transformer_forward.34} parent=43 // pred_check
        %p442 = pneg %p163
      $region46: #{transformer_forward.34} parent=43 // pred_check_branch
        %444 = sbr.rel (%p442) target = $region48
      $region47: #{transformer_forward.34} parent=43 // pred_region
        %p445 = scmp.lt.s32.totalorder %s21, 1
        %s446 = scalar_select %p445, %s21, 1
        %p447 = scmp.lt.s32.totalorder %s22, 3
        %s448 = scalar_select %p447, %s22, 3
        %s449 = smul.addr %s446, 4
        %s450 = sadd.s32 %s448, %s449
        %s451 = smul.addr %s450, 8
        %s452 = scalar_lea.vmem %s4, %s451
      $region48: #{transformer_forward.34} parent=43 // pred_fallthru
        _
    $region44: #{transformer_forward.34} parent=5 // pred_fallthru
      _
  $region6: #{transformer_forward.34} parent=0 // loop_footer
    %s14 = sadd.s32 1, %s10
  $region7: #{transformer_forward.34} parent=0 // loop_footer_branch
    %9 = sbr.rel target = $region3
  $region8: #{transformer_forward.34} parent=0 // loop_exit
    _

// kernel: transformer_forward.36
$region0: #{transformer_forward.36}
  #allocation0 [shape = 'u32[]', space=smem, size = 0x4, offset = 0x4, fixed_abs, tag = 'smem constant byte address 0x4 - core index']
  #allocation1 [shape = 'u32[144,128]{1,0:T(1,128)}', space=vmem, size = 0x12000, scoped, tag = 'internal scratch']
  %s0 = inlined_call_operand.vmem [shape: f32[16,32], index: 0, kind: input, shape index: {}]
  %s1 = inlined_call_operand.vmem [shape: f32[32,32], index: 1, kind: input, shape index: {}]
  %s2 = inlined_call_operand.vmem [shape: f32[1,32], index: 2, kind: input, shape index: {}]
  %s3 = inlined_call_operand.vmem [shape: f32[16,32], index: 3, kind: output, shape index: {}]
  %s4 = sld [smem:[#allocation0]]
  $region22: #{transformer_forward.36} parent=0
    _
  %s6 = ssub.s32 1, %s4
  %s7 = scalar_select 0, %s6, %s4
  // Predicated region
  $region2: #{transformer_forward.36} parent=0 // pred_check
    _
  $region3: #{transformer_forward.36} parent=0 // pred_check_branch
    %9 = sbr.rel (0) target = $region5
  $region4: #{transformer_forward.36} parent=0 // pred_region
    _
  $region5: #{transformer_forward.36} parent=0 // pred_fallthru
    _
  // Predicated region
  $region6: #{transformer_forward.36} parent=0 // pred_check
    _
  $region7: #{transformer_forward.36} parent=0 // pred_check_branch
    %11 = sbr.rel (0) target = $region9
  $region8: #{transformer_forward.36} parent=0 // pred_region
    _
  $region9: #{transformer_forward.36} parent=0 // pred_fallthru
    _
  // Predicated region
  $region10: #{transformer_forward.36} parent=0 // pred_check
    _
  $region11: #{transformer_forward.36} parent=0 // pred_check_branch
    %13 = sbr.rel (0) target = $region13
  $region12: #{transformer_forward.36} parent=0 // pred_region
    _
  $region13: #{transformer_forward.36} parent=0 // pred_fallthru
    _
  %v15 = vld [vmem:[%s0] sm:$0xff]
  %v16 = vld [vmem:[%s0 + $0x8] sm:$0xff]
  %v17 = vpack.c.bf16 %v16, %v15
  %v18 = vld [vmem:[%s1] sm:$0xff]
  %v19 = vld [vmem:[%s1 + $0x8] sm:$0xff]
  %v20 = vld [vmem:[%s1 + $0x10] sm:$0xff]
  %v21 = vld [vmem:[%s1 + $0x18] sm:$0xff]
  %v22 = vpack.c.bf16 %v19, %v18
  %v23 = vpack.c.bf16 %v21, %v20
  %v24 = vld [vmem:[%s2] sm:$0x1]
  %v26 = vlaneseq
  %v27 = vshrl.u32 %v26, 7
  %v28 = vsub.s32 0, %v27
  %v29 = vrot.slane %v24, %v28
  %vm31 = vcmask 261120
  %v33 = vsel %vm31, %v17, 0
  %35 = vmatprep.subr.bf16.mxu0 0
  %36 = vmatpush1.bf16.msra.mxu0 %v22
  %37 = vmatprep.subr.bf16.mxu0 0
  %38 = vmatpush1.bf16.msra.mxu0 %v23
  %39 = vmatprep.subr.bf16.mxu0 0
  %40 = vmatpush1.bf16.msra.mxu0 0
  %41 = vmatprep.subr.bf16.mxu0 0
  %42 = vmatpush1.bf16.msra.mxu0 0
  %43 = vmatprep.subr.bf16.mxu0 0
  %44 = vmatpush1.bf16.msra.mxu0 0
  %45 = vmatprep.subr.bf16.mxu0 0
  %46 = vmatpush1.bf16.msra.mxu0 0
  %47 = vmatprep.subr.bf16.mxu0 0
  %48 = vmatpush1.bf16.msra.mxu0 0
  %49 = vmatprep.subr.bf16.mxu0 0
  %50 = vmatpush1.bf16.msra.mxu0 0
  %51 = vmatprep.subr.bf16.mxu0 0
  %52 = vmatpush1.bf16.msra.mxu0 0
  %53 = vmatprep.subr.bf16.mxu0 0
  %54 = vmatpush1.bf16.msra.mxu0 0
  %55 = vmatprep.subr.bf16.mxu0 0
  %56 = vmatpush1.bf16.msra.mxu0 0
  %57 = vmatprep.subr.bf16.mxu0 0
  %58 = vmatpush1.bf16.msra.mxu0 0
  %59 = vmatprep.subr.bf16.mxu0 0
  %60 = vmatpush1.bf16.msra.mxu0 0
  %61 = vmatprep.subr.bf16.mxu0 0
  %62 = vmatpush1.bf16.msra.mxu0 0
  %63 = vmatprep.subr.bf16.mxu0 0
  %64 = vmatpush1.bf16.msra.mxu0 0
  %65 = vmatprep.subr.bf16.mxu0 0
  %66 = vmatpush1.bf16.msra.mxu0 0
  %67 = vmatprep.mubr.bf16.mxu0 0
  %68 = vmatmul.mubr.bf16.gmra.mrb[0].mxu0 %v33
  %v69 = vpop.f32.mrb[0].mxu0
  %v70 = vadd.f32 %v29, %v69
  %v71 = vpop.f32.mrb[0].mxu0
  %v72 = vpop.f32.mrb[0].mxu0
  %v73 = vadd.f32 %v29, %v72
  %v74 = vpop.f32.mrb[0].mxu0
  %75 = vdwg.mxu0
  %76 = vst.msk [vmem:[%s3] sm:$0xff] %vm31, %v70
  %77 = vst.msk [vmem:[%s3 + $0x8] sm:$0xff] %vm31, %v73
  // Predicated region
  $region14: #{transformer_forward.36} parent=0 // pred_check
    _
  $region15: #{transformer_forward.36} parent=0 // pred_check_branch
    %79 = sbr.rel (0) target = $region17
  $region16: #{transformer_forward.36} parent=0 // pred_region
    _
  $region17: #{transformer_forward.36} parent=0 // pred_fallthru
    _
  // Predicated region
  $region18: #{transformer_forward.36} parent=0 // pred_check
    _
  $region19: #{transformer_forward.36} parent=0 // pred_check_branch
    %81 = sbr.rel (0) target = $region21
  $region20: #{transformer_forward.36} parent=0 // pred_region
    _
  $region21: #{transformer_forward.36} parent=0 // pred_fallthru
    _

// kernel: transformer_forward.35
$region0: #{transformer_forward.35}
  #allocation0 [shape = 'u32[]', space=smem, size = 0x4, offset = 0x4, fixed_abs, tag = 'smem constant byte address 0x4 - core index']
  #allocation1 [shape = 'u32[144,128]{1,0:T(1,128)}', space=vmem, size = 0x12000, scoped, tag = 'internal scratch']
  %s0 = inlined_call_operand.vmem [shape: f32[2,4,8,8], index: 0, kind: input, shape index: {}]
  %s1 = inlined_call_operand.vmem [shape: f32[2,8,32], index: 1, kind: input, shape index: {}]
  %s2 = inlined_call_operand.vmem [shape: f32[4,8,32], index: 2, kind: input, shape index: {}]
  %s3 = inlined_call_operand.vmem [shape: f32[1,32], index: 3, kind: input, shape index: {}]
  %s4 = inlined_call_operand.vmem [shape: f32[1,32], index: 4, kind: input, shape index: {}]
  %s5 = inlined_call_operand.vmem [shape: f32[1,32], index: 5, kind: input, shape index: {}]
  %s6 = inlined_call_operand.vmem [shape: f32[2,8,32], index: 6, kind: output, shape index: {}]
  %s7 = sld [smem:[#allocation0]]
  $region57: #{transformer_forward.35} parent=0
    _
  %s9 = ssub.s32 1, %s7
  %s10 = scalar_select 0, %s9, %s7
  loop: start=0, step=1, limit=4
  $region2: #{transformer_forward.35} parent=0 // loop_pre_header
    _
  $region3: #{transformer_forward.35} parent=0 // loop_header
    %s12 = sphi 0, %s16
    %p13 = scmp.ge.s32.totalorder %s12, 4
    %s22 = sphi 0, %s24
    %s25 = sphi 0, %s22
    %s26 = sphi 0, %s25
    %s42 = sphi 0, %s26
    %s48 = sphi 0, %s50
    %s51 = sphi 0, %s48
    %s52 = sphi 0, %s51
    %s68 = sphi 0, %s52
    %s72 = sphi 0, %s72
    %s74 = sphi 0, %s72
    %s75 = sphi 0, %s74
    %s89 = sphi 0, %s75
    %s93 = sphi 0, %s93
    %s95 = sphi 0, %s93
    %s96 = sphi 0, %s95
    %s110 = sphi 0, %s96
    %s114 = sphi 0, %s114
    %s116 = sphi 0, %s114
    %s117 = sphi 0, %s116
    %s131 = sphi 0, %s117
    %s135 = sphi 0, %s135
    %s137 = sphi 0, %s135
    %s138 = sphi 0, %s137
    %s152 = sphi 0, %s138
    %s158 = sphi 0, %s160
    %s161 = sphi 0, %s158
    %s162 = sphi 0, %s161
    %s178 = sphi 0, %s162
  $region4: #{transformer_forward.35} parent=0 // loop_header_branch
    %15 = sbr.rel (%p13) target = $region8
  $region5: #{transformer_forward.35} parent=0 // loop_body
    %s17 = ssub.s32 %s12, 1
    %s18 = ssub.s32 %s12, 2
    %s19 = sadd.s32 %s12, 1
    %s20 = ssub.s32 %s12, %s19
    %p21 = scmp.eq.s32.totalorder %s20, 0
    %s23 = sadd.s32 %s22, 1
    %s24 = scalar_select %p21, %s22, %s23
    %p27 = pneg %p21
    %p28 = scmp.eq.s32.totalorder %s12, 1
    %p29 = por %p27, %p28
    %p30 = scmp.ne.s32.totalorder %s22, %s25
    %p31 = scmp.eq.s32.totalorder %s12, 0
    %p32 = por %p30, %p31
    %p33 = scmp.ne.s32.totalorder %s22, %s25
    %p34 = scmp.eq.s32.totalorder %s17, 1
    %p35 = por %p33, %p34
    %p36 = scmp.ne.s32.totalorder %s25, %s26
    %p37 = scmp.eq.s32.totalorder %s17, 0
    %p38 = por %p36, %p37
    %p39 = scmp.ne.s32.totalorder %s25, %s26
    %p40 = scmp.eq.s32.totalorder %s18, 1
    %p41 = por %p39, %p40
    %p43 = scmp.ne.s32.totalorder %s26, %s42
    %p44 = scmp.eq.s32.totalorder %s18, 0
    %p45 = por %p43, %p44
    %s46 = ssub.s32 %s12, %s19
    %p47 = scmp.eq.s32.totalorder %s46, 0
    %s49 = sadd.s32 %s48, 1
    %s50 = scalar_select %p47, %s48, %s49
    %p53 = pneg %p47
    %p54 = scmp.eq.s32.totalorder %s12, 1
    %p55 = por %p53, %p54
    %p56 = scmp.ne.s32.totalorder %s48, %s51
    %p57 = scmp.eq.s32.totalorder %s12, 0
    %p58 = por %p56, %p57
    %p59 = scmp.ne.s32.totalorder %s48, %s51
    %p60 = scmp.eq.s32.totalorder %s17, 1
    %p61 = por %p59, %p60
    %p62 = scmp.ne.s32.totalorder %s51, %s52
    %p63 = scmp.eq.s32.totalorder %s17, 0
    %p64 = por %p62, %p63
    %p65 = scmp.ne.s32.totalorder %s51, %s52
    %p66 = scmp.eq.s32.totalorder %s18, 1
    %p67 = por %p65, %p66
    %p69 = scmp.ne.s32.totalorder %s52, %s68
    %p70 = scmp.eq.s32.totalorder %s18, 0
    %p71 = por %p69, %p70
    %s73 = sadd.s32 %s72, 1
    %p76 = scmp.eq.s32.totalorder %s12, 1
    %p77 = scmp.ne.s32.totalorder %s72, %s74
    %p78 = scmp.eq.s32.totalorder %s12, 0
    %p79 = por %p77, %p78
    %p80 = scmp.ne.s32.totalorder %s72, %s74
    %p81 = scmp.eq.s32.totalorder %s17, 1
    %p82 = por %p80, %p81
    %p83 = scmp.ne.s32.totalorder %s74, %s75
    %p84 = scmp.eq.s32.totalorder %s17, 0
    %p85 = por %p83, %p84
    %p86 = scmp.ne.s32.totalorder %s74, %s75
    %p87 = scmp.eq.s32.totalorder %s18, 1
    %p88 = por %p86, %p87
    %p90 = scmp.ne.s32.totalorder %s75, %s89
    %p91 = scmp.eq.s32.totalorder %s18, 0
    %p92 = por %p90, %p91
    %s94 = sadd.s32 %s93, 1
    %p97 = scmp.eq.s32.totalorder %s12, 1
    %p98 = scmp.ne.s32.totalorder %s93, %s95
    %p99 = scmp.eq.s32.totalorder %s12, 0
    %p100 = por %p98, %p99
    %p101 = scmp.ne.s32.totalorder %s93, %s95
    %p102 = scmp.eq.s32.totalorder %s17, 1
    %p103 = por %p101, %p102
    %p104 = scmp.ne.s32.totalorder %s95, %s96
    %p105 = scmp.eq.s32.totalorder %s17, 0
    %p106 = por %p104, %p105
    %p107 = scmp.ne.s32.totalorder %s95, %s96
    %p108 = scmp.eq.s32.totalorder %s18, 1
    %p109 = por %p107, %p108
    %p111 = scmp.ne.s32.totalorder %s96, %s110
    %p112 = scmp.eq.s32.totalorder %s18, 0
    %p113 = por %p111, %p112
    %s115 = sadd.s32 %s114, 1
    %p118 = scmp.eq.s32.totalorder %s12, 1
    %p119 = scmp.ne.s32.totalorder %s114, %s116
    %p120 = scmp.eq.s32.totalorder %s12, 0
    %p121 = por %p119, %p120
    %p122 = scmp.ne.s32.totalorder %s114, %s116
    %p123 = scmp.eq.s32.totalorder %s17, 1
    %p124 = por %p122, %p123
    %p125 = scmp.ne.s32.totalorder %s116, %s117
    %p126 = scmp.eq.s32.totalorder %s17, 0
    %p127 = por %p125, %p126
    %p128 = scmp.ne.s32.totalorder %s116, %s117
    %p129 = scmp.eq.s32.totalorder %s18, 1
    %p130 = por %p128, %p129
    %p132 = scmp.ne.s32.totalorder %s117, %s131
    %p133 = scmp.eq.s32.totalorder %s18, 0
    %p134 = por %p132, %p133
    %s136 = sadd.s32 %s135, 1
    %p139 = scmp.eq.s32.totalorder %s12, 1
    %p140 = scmp.ne.s32.totalorder %s135, %s137
    %p141 = scmp.eq.s32.totalorder %s12, 0
    %p142 = por %p140, %p141
    %p143 = scmp.ne.s32.totalorder %s135, %s137
    %p144 = scmp.eq.s32.totalorder %s17, 1
    %p145 = por %p143, %p144
    %p146 = scmp.ne.s32.totalorder %s137, %s138
    %p147 = scmp.eq.s32.totalorder %s17, 0
    %p148 = por %p146, %p147
    %p149 = scmp.ne.s32.totalorder %s137, %s138
    %p150 = scmp.eq.s32.totalorder %s18, 1
    %p151 = por %p149, %p150
    %p153 = scmp.ne.s32.totalorder %s138, %s152
    %p154 = scmp.eq.s32.totalorder %s18, 0
    %p155 = por %p153, %p154
    %s156 = ssub.s32 %s12, %s19
    %p157 = scmp.eq.s32.totalorder %s156, 0
    %s159 = sadd.s32 %s158, 1
    %s160 = scalar_select %p157, %s158, %s159
    %p163 = pneg %p157
    %p164 = scmp.eq.s32.totalorder %s12, 1
    %p165 = por %p163, %p164
    %p166 = scmp.ne.s32.totalorder %s158, %s161
    %p167 = scmp.eq.s32.totalorder %s12, 0
    %p168 = por %p166, %p167
    %p169 = scmp.ne.s32.totalorder %s158, %s161
    %p170 = scmp.eq.s32.totalorder %s17, 1
    %p171 = por %p169, %p170
    %p172 = scmp.ne.s32.totalorder %s161, %s162
    %p173 = scmp.eq.s32.totalorder %s17, 0
    %p174 = por %p172, %p173
    %p175 = scmp.ne.s32.totalorder %s161, %s162
    %p176 = scmp.eq.s32.totalorder %s18, 1
    %p177 = por %p175, %p176
    %p179 = scmp.ne.s32.totalorder %s162, %s178
    %p180 = scmp.eq.s32.totalorder %s18, 0
    %p181 = por %p179, %p180
    %p182 = scmp.le.s32.totalorder 1, %s12
    %p183 = scmp.lt.s32.totalorder %s12, 3
    %p184 = pnand %p182, %p183
    %p185 = pneg %p184
    // Predicated region
    $region9: #{transformer_forward.35} parent=5 // pred_check
      _
    $region10: #{transformer_forward.35} parent=5 // pred_check_branch
      %187 = sbr.rel (%p184) target = $region12
    $region11: #{transformer_forward.35} parent=5 // pred_region
      %s188 = ssub.s32 %s12, 1
      // Predicated region
      $region13: #{transformer_forward.35} parent=11 // pred_check
        %p189 = pneg %p85
      $region14: #{transformer_forward.35} parent=11 // pred_check_branch
        %191 = sbr.rel (%p189) target = $region16
      $region15: #{transformer_forward.35} parent=11 // pred_region
        _
      $region16: #{transformer_forward.35} parent=11 // pred_fallthru
        _
      // Predicated region
      $region17: #{transformer_forward.35} parent=11 // pred_check
        %p192 = pneg %p106
      $region18: #{transformer_forward.35} parent=11 // pred_check_branch
        %194 = sbr.rel (%p192) target = $region20
      $region19: #{transformer_forward.35} parent=11 // pred_region
        _
      $region20: #{transformer_forward.35} parent=11 // pred_fallthru
        _
      // Predicated region
      $region21: #{transformer_forward.35} parent=11 // pred_check
        %p195 = pneg %p127
      $region22: #{transformer_forward.35} parent=11 // pred_check_branch
        %197 = sbr.rel (%p195) target = $region24
      $region23: #{transformer_forward.35} parent=11 // pred_region
        _
      $region24: #{transformer_forward.35} parent=11 // pred_fallthru
        _
      // Predicated region
      $region25: #{transformer_forward.35} parent=11 // pred_check
        %p198 = pneg %p148
      $region26: #{transformer_forward.35} parent=11 // pred_check_branch
        %200 = sbr.rel (%p198) target = $region28
      $region27: #{transformer_forward.35} parent=11 // pred_region
        _
      $region28: #{transformer_forward.35} parent=11 // pred_fallthru
        _
    $region12: #{transformer_forward.35} parent=5 // pred_fallthru
      _
    %p201 = scmp.lt.s32.totalorder %s12, 2
    // Predicated region
    $region29: #{transformer_forward.35} parent=5 // pred_check
      %p202 = pneg %p201
    $region30: #{transformer_forward.35} parent=5 // pred_check_branch
      %204 = sbr.rel (%p202) target = $region32
    $region31: #{transformer_forward.35} parent=5 // pred_region
      // Predicated region
      $region33: #{transformer_forward.35} parent=31 // pred_check
        %p205 = pneg %p32
      $region34: #{transformer_forward.35} parent=31 // pred_check_branch
        %207 = sbr.rel (%p205) target = $region36
      $region35: #{transformer_forward.35} parent=31 // pred_region
        %p208 = scmp.lt.s32.totalorder %s12, 1
        %s209 = scalar_select %p208, %s12, 1
        %s210 = smul.addr %s209, 4
        %s211 = smul.addr %s210, 8
        %s212 = scalar_lea.vmem %s0, %s211
      $region36: #{transformer_forward.35} parent=31 // pred_fallthru
        _
      // Predicated region
      $region37: #{transformer_forward.35} parent=31 // pred_check
        %p213 = pneg %p58
      $region38: #{transformer_forward.35} parent=31 // pred_check_branch
        %215 = sbr.rel (%p213) target = $region40
      $region39: #{transformer_forward.35} parent=31 // pred_region
        %p216 = scmp.lt.s32.totalorder %s12, 1
        %s217 = scalar_select %p216, %s12, 1
        %s218 = smul.addr %s217, 8
        %s219 = scalar_lea.vmem %s1, %s218
      $region40: #{transformer_forward.35} parent=31 // pred_fallthru
        _
    $region32: #{transformer_forward.35} parent=5 // pred_fallthru
      _
    %p220 = scmp.le.s32.totalorder 1, %s12
    %p221 = scmp.lt.s32.totalorder %s12, 3
    %p222 = pnand %p220, %p221
    %p223 = pneg %p222
    // Predicated region
    $region41: #{transformer_forward.35} parent=5 // pred_check
      _
    $region42: #{transformer_forward.35} parent=5 // pred_check_branch
      %225 = sbr.rel (%p222) target = $region44
    $region43: #{transformer_forward.35} parent=5 // pred_region
      %s226 = ssub.s32 %s12, 1
      %p227 = scmp.lt.s32.totalorder %s17, 1
      %s228 = scalar_select %p227, %s17, 1
      %s229 = smul.addr %s228, 4
      %s230 = smul.addr %s229, 8
      %s231 = scalar_lea.vmem %s0, %s230
      %p232 = pneg %p38
      %p233 = pneg %p35
      %p234 = scmp.lt.s32.totalorder %s17, 1
      %s235 = scalar_select %p234, %s17, 1
      %s236 = smul.addr %s235, 8
      %s237 = scalar_lea.vmem %s1, %s236
      %p238 = pneg %p64
      %p239 = pneg %p61
      %p240 = pneg %p85
      %p241 = pneg %p82
      %p242 = pneg %p106
      %p243 = pneg %p103
      %p244 = pneg %p127
      %p245 = pneg %p124
      %p246 = pneg %p148
      %p247 = pneg %p145
      %p248 = pneg %p174
      %p249 = pneg %p171
      %p250 = scmp.lt.s32.totalorder %s17, 1
      %s251 = scalar_select %p250, %s17, 1
      %s252 = smul.addr %s251, 8
      %s253 = scalar_lea.vmem %s6, %s252
      %p254 = scmp.lt.s32.totalorder %s17, 1
      %s255 = scalar_select %p254, %s17, 1
      %s256 = smul.addr %s255, 4
      %s257 = smul.addr %s256, 8
      %s258 = scalar_lea.vmem %s0, %s257
      %p259 = scmp.lt.s32.totalorder %s17, 1
      %s260 = scalar_select %p259, %s17, 1
      %s261 = smul.addr %s260, 8
      %s262 = scalar_lea.vmem %s1, %s261
      %p263 = scmp.lt.s32.totalorder %s17, 1
      %s264 = scalar_select %p263, %s17, 1
      %s265 = smul.addr %s264, 8
      %s266 = scalar_lea.vmem %s6, %s265
      %v268 = vld [vmem:[%s258] sm:$0xff]
      %v269 = vpack.c.bf16 %v268, %v268
      %v270 = vld [vmem:[%s2] sm:$0xff]
      %v271 = vpack.c.bf16 %v270, %v270
      %s272 = scalar_lea.vmem %s258, 8
      %v273 = vld [vmem:[%s272] sm:$0xff]
      %v274 = vpack.c.bf16 %v273, %v273
      %s275 = scalar_lea.vmem %s2, 8
      %v276 = vld [vmem:[%s275] sm:$0xff]
      %v277 = vpack.c.bf16 %v276, %v276
      %vm278 = vcmask 64512
      %v280 = vsel %vm278, %v274, 0
      %vm282 = vcmask 1043456
      %v284 = vsel %vm282, %v277, 0
      %286 = vmatprep.subr.bf16.mxu0 0
      %287 = vmatpush1.bf16.msra.mxu0 %v284
      %288 = vmatprep.subr.bf16.mxu0 0
      %289 = vmatpush1.bf16.msra.mxu0 0
      %290 = vmatprep.subr.bf16.mxu0 0
      %291 = vmatpush1.bf16.msra.mxu0 0
      %292 = vmatprep.subr.bf16.mxu0 0
      %293 = vmatpush1.bf16.msra.mxu0 0
      %294 = vmatprep.subr.bf16.mxu0 0
      %295 = vmatpush1.bf16.msra.mxu0 0
      %296 = vmatprep.subr.bf16.mxu0 0
      %297 = vmatpush1.bf16.msra.mxu0 0
      %298 = vmatprep.subr.bf16.mxu0 0
      %299 = vmatpush1.bf16.msra.mxu0 0
      %300 = vmatprep.subr.bf16.mxu0 0
      %301 = vmatpush1.bf16.msra.mxu0 0
      %302 = vmatprep.subr.bf16.mxu0 0
      %303 = vmatpush1.bf16.msra.mxu0 0
      %304 = vmatprep.subr.bf16.mxu0 0
      %305 = vmatpush1.bf16.msra.mxu0 0
      %306 = vmatprep.subr.bf16.mxu0 0
      %307 = vmatpush1.bf16.msra.mxu0 0
      %308 = vmatprep.subr.bf16.mxu0 0
      %309 = vmatpush1.bf16.msra.mxu0 0
      %310 = vmatprep.subr.bf16.mxu0 0
      %311 = vmatpush1.bf16.msra.mxu0 0
      %312 = vmatprep.subr.bf16.mxu0 0
      %313 = vmatpush1.bf16.msra.mxu0 0
      %314 = vmatprep.subr.bf16.mxu0 0
      %315 = vmatpush1.bf16.msra.mxu0 0
      %316 = vmatprep.subr.bf16.mxu0 0
      %317 = vmatpush1.bf16.msra.mxu0 0
      %318 = vmatprep.mubr.bf16.mxu0 0
      %319 = vmatmul.mubr.bf16.gmra.mrb[0].mxu0 %v280
      %v320 = vpop.f32.mrb[0].mxu0
      %v321 = vadd.f32 0.0, %v320
      %v322 = vpop.f32.mrb[0].mxu0
      %v323 = vpop.f32.mrb[0].mxu0
      %v324 = vpop.f32.mrb[0].mxu0
      %325 = vdwg.mxu0
      %v327 = vsel %vm278, %v269, 0
      %v330 = vsel %vm282, %v271, 0
      %332 = vmatprep.subr.bf16.mxu0 0
      %333 = vmatpush1.bf16.msra.mxu0 %v330
      %334 = vmatprep.subr.bf16.mxu0 0
      %335 = vmatpush1.bf16.msra.mxu0 0
      %336 = vmatprep.subr.bf16.mxu0 0
      %337 = vmatpush1.bf16.msra.mxu0 0
      %338 = vmatprep.subr.bf16.mxu0 0
      %339 = vmatpush1.bf16.msra.mxu0 0
      %340 = vmatprep.subr.bf16.mxu0 0
      %341 = vmatpush1.bf16.msra.mxu0 0
      %342 = vmatprep.subr.bf16.mxu0 0
      %343 = vmatpush1.bf16.msra.mxu0 0
      %344 = vmatprep.subr.bf16.mxu0 0
      %345 = vmatpush1.bf16.msra.mxu0 0
      %346 = vmatprep.subr.bf16.mxu0 0
      %347 = vmatpush1.bf16.msra.mxu0 0
      %348 = vmatprep.subr.bf16.mxu0 0
      %349 = vmatpush1.bf16.msra.mxu0 0
      %350 = vmatprep.subr.bf16.mxu0 0
      %351 = vmatpush1.bf16.msra.mxu0 0
      %352 = vmatprep.subr.bf16.mxu0 0
      %353 = vmatpush1.bf16.msra.mxu0 0
      %354 = vmatprep.subr.bf16.mxu0 0
      %355 = vmatpush1.bf16.msra.mxu0 0
      %356 = vmatprep.subr.bf16.mxu0 0
      %357 = vmatpush1.bf16.msra.mxu0 0
      %358 = vmatprep.subr.bf16.mxu0 0
      %359 = vmatpush1.bf16.msra.mxu0 0
      %360 = vmatprep.subr.bf16.mxu0 0
      %361 = vmatpush1.bf16.msra.mxu0 0
      %362 = vmatprep.subr.bf16.mxu0 0
      %363 = vmatpush1.bf16.msra.mxu0 0
      %364 = vmatprep.mubr.bf16.mxu0 0
      %365 = vmatmul.mubr.bf16.gmra.mrb[0].mxu0 %v327
      %v366 = vpop.f32.mrb[0].mxu0
      %v367 = vadd.f32 %v321, %v366
      %v368 = vpop.f32.mrb[0].mxu0
      %v369 = vpop.f32.mrb[0].mxu0
      %v370 = vpop.f32.mrb[0].mxu0
      %371 = vdwg.mxu0
      %s372 = scalar_lea.vmem %s258, 16
      %v373 = vld [vmem:[%s372] sm:$0xff]
      %v374 = vpack.c.bf16 %v373, %v373
      %s375 = scalar_lea.vmem %s2, 16
      %v376 = vld [vmem:[%s375] sm:$0xff]
      %v377 = vpack.c.bf16 %v376, %v376
      %v379 = vsel %vm278, %v374, 0
      %v382 = vsel %vm282, %v377, 0
      %384 = vmatprep.subr.bf16.mxu0 0
      %385 = vmatpush1.bf16.msra.mxu0 %v382
      %386 = vmatprep.subr.bf16.mxu0 0
      %387 = vmatpush1.bf16.msra.mxu0 0
      %388 = vmatprep.subr.bf16.mxu0 0
      %389 = vmatpush1.bf16.msra.mxu0 0
      %390 = vmatprep.subr.bf16.mxu0 0
      %391 = vmatpush1.bf16.msra.mxu0 0
      %392 = vmatprep.subr.bf16.mxu0 0
      %393 = vmatpush1.bf16.msra.mxu0 0
      %394 = vmatprep.subr.bf16.mxu0 0
      %395 = vmatpush1.bf16.msra.mxu0 0
      %396 = vmatprep.subr.bf16.mxu0 0
      %397 = vmatpush1.bf16.msra.mxu0 0
      %398 = vmatprep.subr.bf16.mxu0 0
      %399 = vmatpush1.bf16.msra.mxu0 0
      %400 = vmatprep.subr.bf16.mxu0 0
      %401 = vmatpush1.bf16.msra.mxu0 0
      %402 = vmatprep.subr.bf16.mxu0 0
      %403 = vmatpush1.bf16.msra.mxu0 0
      %404 = vmatprep.subr.bf16.mxu0 0
      %405 = vmatpush1.bf16.msra.mxu0 0
      %406 = vmatprep.subr.bf16.mxu0 0
      %407 = vmatpush1.bf16.msra.mxu0 0
      %408 = vmatprep.subr.bf16.mxu0 0
      %409 = vmatpush1.bf16.msra.mxu0 0
      %410 = vmatprep.subr.bf16.mxu0 0
      %411 = vmatpush1.bf16.msra.mxu0 0
      %412 = vmatprep.subr.bf16.mxu0 0
      %413 = vmatpush1.bf16.msra.mxu0 0
      %414 = vmatprep.subr.bf16.mxu0 0
      %415 = vmatpush1.bf16.msra.mxu0 0
      %416 = vmatprep.mubr.bf16.mxu0 0
      %417 = vmatmul.mubr.bf16.gmra.mrb[0].mxu0 %v379
      %v418 = vpop.f32.mrb[0].mxu0
      %v419 = vadd.f32 0.0, %v418
      %v420 = vpop.f32.mrb[0].mxu0
      %v421 = vpop.f32.mrb[0].mxu0
      %v422 = vpop.f32.mrb[0].mxu0
      %423 = vdwg.mxu0
      %v424 = vadd.f32 %v367, %v419
      %s425 = scalar_lea.vmem %s258, 24
      %v426 = vld [vmem:[%s425] sm:$0xff]
      %v427 = vpack.c.bf16 %v426, %v426
      %s428 = scalar_lea.vmem %s2, 24
      %v429 = vld [vmem:[%s428] sm:$0xff]
      %v430 = vpack.c.bf16 %v429, %v429
      %v432 = vsel %vm278, %v427, 0
      %v435 = vsel %vm282, %v430, 0
      %437 = vmatprep.subr.bf16.mxu0 0
      %438 = vmatpush1.bf16.msra.mxu0 %v435
      %439 = vmatprep.subr.bf16.mxu0 0
      %440 = vmatpush1.bf16.msra.mxu0 0
      %441 = vmatprep.subr.bf16.mxu0 0
      %442 = vmatpush1.bf16.msra.mxu0 0
      %443 = vmatprep.subr.bf16.mxu0 0
      %444 = vmatpush1.bf16.msra.mxu0 0
      %445 = vmatprep.subr.bf16.mxu0 0
      %446 = vmatpush1.bf16.msra.mxu0 0
      %447 = vmatprep.subr.bf16.mxu0 0
      %448 = vmatpush1.bf16.msra.mxu0 0
      %449 = vmatprep.subr.bf16.mxu0 0
      %450 = vmatpush1.bf16.msra.mxu0 0
      %451 = vmatprep.subr.bf16.mxu0 0
      %452 = vmatpush1.bf16.msra.mxu0 0
      %453 = vmatprep.subr.bf16.mxu0 0
      %454 = vmatpush1.bf16.msra.mxu0 0
      %455 = vmatprep.subr.bf16.mxu0 0
      %456 = vmatpush1.bf16.msra.mxu0 0
      %457 = vmatprep.subr.bf16.mxu0 0
      %458 = vmatpush1.bf16.msra.mxu0 0
      %459 = vmatprep.subr.bf16.mxu0 0
      %460 = vmatpush1.bf16.msra.mxu0 0
      %461 = vmatprep.subr.bf16.mxu0 0
      %462 = vmatpush1.bf16.msra.mxu0 0
      %463 = vmatprep.subr.bf16.mxu0 0
      %464 = vmatpush1.bf16.msra.mxu0 0
      %465 = vmatprep.subr.bf16.mxu0 0
      %466 = vmatpush1.bf16.msra.mxu0 0
      %467 = vmatprep.subr.bf16.mxu0 0
      %468 = vmatpush1.bf16.msra.mxu0 0
      %469 = vmatprep.mubr.bf16.mxu0 0
      %470 = vmatmul.mubr.bf16.gmra.mrb[0].mxu0 %v432
      %v471 = vpop.f32.mrb[0].mxu0
      %v472 = vadd.f32 0.0, %v471
      %v473 = vpop.f32.mrb[0].mxu0
      %v474 = vpop.f32.mrb[0].mxu0
      %v475 = vpop.f32.mrb[0].mxu0
      %476 = vdwg.mxu0
      %v477 = vadd.f32 %v424, %v472
      %v478 = vld [vmem:[%s262] sm:$0xff]
      %v479 = vadd.f32 %v478, %v477
      %v480 = vld [vmem:[%s3] sm:$0x1]
      %v482 = vlaneseq
      %v483 = vshrl.u32 %v482, 7
      %v484 = vsub.s32 0, %v483
      %v485 = vrot.slane %v480, %v484
      %v487 = vadd.f32 %v479, %v485
      %vm488 = vcmask 261120
      %v489 = vsel %vm488, %v487, 0.0
      %490 = vadd.xlane.f32.xlu0 %v489
      %v491 = vpop.xlane.xlu0 %490
      %v492 = vrcp.pop 32.0
      %v493 = vmul.f32 %v491, %v492
      %v494 = vsub.f32 %v487, %v493
      %v495 = vmul.f32 %v494, %v494
      %v496 = vsel %vm488, %v495, 0.0
      %497 = vadd.xlane.f32.xlu0 %v496
      %v498 = vpop.xlane.xlu0 %497
      %v499 = vmul.f32 %v498, %v492
      %v500 = vadd.f32 %v499, 1e-05
      %v501 = vrsqrt.pop %v500
      %v502 = vmul.f32 %v494, %v501
      %v503 = vld [vmem:[%s4] sm:$0x1]
      %v505 = vlaneseq
      %v506 = vshrl.u32 %v505, 7
      %v507 = vsub.s32 0, %v506
      %v508 = vrot.slane %v503, %v507
      %v510 = vmul.f32 %v502, %v508
      %v511 = vld [vmem:[%s5] sm:$0x1]
      %v513 = vlaneseq
      %v514 = vshrl.u32 %v513, 7
      %v515 = vsub.s32 0, %v514
      %v516 = vrot.slane %v511, %v515
      %v518 = vadd.f32 %v510, %v516
      %519 = vst.msk [vmem:[%s266] sm:$0xff] %vm488, %v518
      %p520 = scmp.lt.s32.totalorder %s17, 1
      %s521 = scalar_select %p520, %s17, 1
      %s522 = smul.addr %s521, 8
      %s523 = scalar_lea.vmem %s6, %s522
      // Predicated region
      $region45: #{transformer_forward.35} parent=43 // pred_check
        %p524 = pneg %p171
      $region46: #{transformer_forward.35} parent=43 // pred_check_branch
        %526 = sbr.rel (%p524) target = $region48
      $region47: #{transformer_forward.35} parent=43 // pred_region
        _
      $region48: #{transformer_forward.35} parent=43 // pred_fallthru
        _
    $region44: #{transformer_forward.35} parent=5 // pred_fallthru
      _
    %p527 = scmp.le.s32.totalorder 2, %s12
    // Predicated region
    $region49: #{transformer_forward.35} parent=5 // pred_check
      %p528 = pneg %p527
    $region50: #{transformer_forward.35} parent=5 // pred_check_branch
      %530 = sbr.rel (%p528) target = $region52
    $region51: #{transformer_forward.35} parent=5 // pred_region
      %s531 = ssub.s32 %s12, 2
      // Predicated region
      $region53: #{transformer_forward.35} parent=51 // pred_check
        %p532 = pneg %p177
      $region54: #{transformer_forward.35} parent=51 // pred_check_branch
        %534 = sbr.rel (%p532) target = $region56
      $region55: #{transformer_forward.35} parent=51 // pred_region
        %p535 = scmp.lt.s32.totalorder %s18, 1
        %s536 = scalar_select %p535, %s18, 1
        %s537 = smul.addr %s536, 8
        %s538 = scalar_lea.vmem %s6, %s537
      $region56: #{transformer_forward.35} parent=51 // pred_fallthru
        _
    $region52: #{transformer_forward.35} parent=5 // pred_fallthru
      _
  $region6: #{transformer_forward.35} parent=0 // loop_footer
    %s16 = sadd.s32 1, %s12
  $region7: #{transformer_forward.35} parent=0 // loop_footer_branch
    %11 = sbr.rel target = $region3
  $region8: #{transformer_forward.35} parent=0 // loop_exit
    _

// kernel: transformer_forward.28
$region0: #{transformer_forward.28}
  #allocation0 [shape = 'u32[]', space=smem, size = 0x4, offset = 0x4, fixed_abs, tag = 'smem constant byte address 0x4 - core index']
  #allocation1 [shape = 'u32[144,128]{1,0:T(1,128)}', space=vmem, size = 0x12000, scoped, tag = 'internal scratch']
  %s0 = inlined_call_operand.vmem [shape: f32[16,32], index: 0, kind: input, shape index: {}]
  %s1 = inlined_call_operand.vmem [shape: f32[32,64], index: 1, kind: input, shape index: {}]
  %s2 = inlined_call_operand.vmem [shape: f32[1,64], index: 2, kind: input, shape index: {}]
  %s3 = inlined_call_operand.vmem [shape: f32[64,32], index: 3, kind: input, shape index: {}]
  %s4 = inlined_call_operand.vmem [shape: f32[1,32], index: 4, kind: input, shape index: {}]
  %s5 = inlined_call_operand.vmem [shape: f32[1,32], index: 5, kind: input, shape index: {}]
  %s6 = inlined_call_operand.vmem [shape: f32[1,32], index: 6, kind: input, shape index: {}]
  %s7 = inlined_call_operand.vmem [shape: f32[16,32], index: 7, kind: output, shape index: {}]
  %s8 = sld [smem:[#allocation0]]
  $region38: #{transformer_forward.28} parent=0
    _
  %s10 = ssub.s32 1, %s8
  %s11 = scalar_select 0, %s10, %s8
  // Predicated region
  $region2: #{transformer_forward.28} parent=0 // pred_check
    _
  $region3: #{transformer_forward.28} parent=0 // pred_check_branch
    %13 = sbr.rel (0) target = $region5
  $region4: #{transformer_forward.28} parent=0 // pred_region
    _
  $region5: #{transformer_forward.28} parent=0 // pred_fallthru
    _
  // Predicated region
  $region6: #{transformer_forward.28} parent=0 // pred_check
    _
  $region7: #{transformer_forward.28} parent=0 // pred_check_branch
    %15 = sbr.rel (0) target = $region9
  $region8: #{transformer_forward.28} parent=0 // pred_region
    _
  $region9: #{transformer_forward.28} parent=0 // pred_fallthru
    _
  // Predicated region
  $region10: #{transformer_forward.28} parent=0 // pred_check
    _
  $region11: #{transformer_forward.28} parent=0 // pred_check_branch
    %17 = sbr.rel (0) target = $region13
  $region12: #{transformer_forward.28} parent=0 // pred_region
    _
  $region13: #{transformer_forward.28} parent=0 // pred_fallthru
    _
  // Predicated region
  $region14: #{transformer_forward.28} parent=0 // pred_check
    _
  $region15: #{transformer_forward.28} parent=0 // pred_check_branch
    %19 = sbr.rel (0) target = $region17
  $region16: #{transformer_forward.28} parent=0 // pred_region
    _
  $region17: #{transformer_forward.28} parent=0 // pred_fallthru
    _
  // Predicated region
  $region18: #{transformer_forward.28} parent=0 // pred_check
    _
  $region19: #{transformer_forward.28} parent=0 // pred_check_branch
    %21 = sbr.rel (0) target = $region21
  $region20: #{transformer_forward.28} parent=0 // pred_region
    _
  $region21: #{transformer_forward.28} parent=0 // pred_fallthru
    _
  // Predicated region
  $region22: #{transformer_forward.28} parent=0 // pred_check
    _
  $region23: #{transformer_forward.28} parent=0 // pred_check_branch
    %23 = sbr.rel (0) target = $region25
  $region24: #{transformer_forward.28} parent=0 // pred_region
    _
  $region25: #{transformer_forward.28} parent=0 // pred_fallthru
    _
  // Predicated region
  $region26: #{transformer_forward.28} parent=0 // pred_check
    _
  $region27: #{transformer_forward.28} parent=0 // pred_check_branch
    %25 = sbr.rel (0) target = $region29
  $region28: #{transformer_forward.28} parent=0 // pred_region
    _
  $region29: #{transformer_forward.28} parent=0 // pred_fallthru
    _
  %v27 = vld [vmem:[%s0] sm:$0xff]
  %v28 = vld [vmem:[%s0 + $0x8] sm:$0xff]
  %v29 = vpack.c.bf16 %v28, %v27
  %v30 = vld [vmem:[%s1] sm:$0xff]
  %v31 = vld [vmem:[%s1 + $0x8] sm:$0xff]
  %v32 = vld [vmem:[%s1 + $0x10] sm:$0xff]
  %v33 = vld [vmem:[%s1 + $0x18] sm:$0xff]
  %v34 = vpack.c.bf16 %v31, %v30
  %v35 = vpack.c.bf16 %v33, %v32
  %v36 = vld [vmem:[%s2] sm:$0x1]
  %v38 = vlaneseq
  %v39 = vshrl.u32 %v38, 7
  %v40 = vsub.s32 0, %v39
  %v41 = vrot.slane %v36, %v40
  %vm43 = vcmask 261120
  %v45 = vsel %vm43, %v29, 0
  %47 = vmatprep.subr.bf16.mxu0 0
  %48 = vmatpush1.bf16.msra.mxu0 %v34
  %49 = vmatprep.subr.bf16.mxu0 0
  %50 = vmatpush1.bf16.msra.mxu0 %v35
  %51 = vmatprep.subr.bf16.mxu0 0
  %52 = vmatpush1.bf16.msra.mxu0 0
  %53 = vmatprep.subr.bf16.mxu0 0
  %54 = vmatpush1.bf16.msra.mxu0 0
  %55 = vmatprep.subr.bf16.mxu0 0
  %56 = vmatpush1.bf16.msra.mxu0 0
  %57 = vmatprep.subr.bf16.mxu0 0
  %58 = vmatpush1.bf16.msra.mxu0 0
  %59 = vmatprep.subr.bf16.mxu0 0
  %60 = vmatpush1.bf16.msra.mxu0 0
  %61 = vmatprep.subr.bf16.mxu0 0
  %62 = vmatpush1.bf16.msra.mxu0 0
  %63 = vmatprep.subr.bf16.mxu0 0
  %64 = vmatpush1.bf16.msra.mxu0 0
  %65 = vmatprep.subr.bf16.mxu0 0
  %66 = vmatpush1.bf16.msra.mxu0 0
  %67 = vmatprep.subr.bf16.mxu0 0
  %68 = vmatpush1.bf16.msra.mxu0 0
  %69 = vmatprep.subr.bf16.mxu0 0
  %70 = vmatpush1.bf16.msra.mxu0 0
  %71 = vmatprep.subr.bf16.mxu0 0
  %72 = vmatpush1.bf16.msra.mxu0 0
  %73 = vmatprep.subr.bf16.mxu0 0
  %74 = vmatpush1.bf16.msra.mxu0 0
  %75 = vmatprep.subr.bf16.mxu0 0
  %76 = vmatpush1.bf16.msra.mxu0 0
  %77 = vmatprep.subr.bf16.mxu0 0
  %78 = vmatpush1.bf16.msra.mxu0 0
  %79 = vmatprep.mubr.bf16.mxu0 0
  %80 = vmatmul.mubr.bf16.gmra.mrb[0].mxu0 %v45
  %v81 = vpop.f32.mrb[0].mxu0
  %v82 = vadd.f32 %v41, %v81
  %v83 = vpop.f32.mrb[0].mxu0
  %v84 = vpop.f32.mrb[0].mxu0
  %v85 = vadd.f32 %v41, %v84
  %v86 = vpop.f32.mrb[0].mxu0
  %87 = vdwg.mxu0
  %v88 = vmax.f32 %v82, 0.0
  %v89 = vmax.f32 %v85, 0.0
  %v90 = vpack.c.bf16 %v89, %v88
  %v91 = vld [vmem:[%s3] sm:$0xff]
  %v92 = vld [vmem:[%s3 + $0x8] sm:$0xff]
  %v93 = vld [vmem:[%s3 + $0x10] sm:$0xff]
  %v94 = vld [vmem:[%s3 + $0x18] sm:$0xff]
  %v95 = vld [vmem:[%s3 + $0x20] sm:$0xff]
  %v96 = vld [vmem:[%s3 + $0x28] sm:$0xff]
  %v97 = vld [vmem:[%s3 + $0x30] sm:$0xff]
  %v98 = vld [vmem:[%s3 + $0x38] sm:$0xff]
  %v99 = vpack.c.bf16 %v92, %v91
  %v100 = vpack.c.bf16 %v94, %v93
  %v101 = vpack.c.bf16 %v96, %v95
  %v102 = vpack.c.bf16 %v98, %v97
  %v103 = vld [vmem:[%s4] sm:$0x1]
  %v105 = vlaneseq
  %v106 = vshrl.u32 %v105, 7
  %v107 = vsub.s32 0, %v106
  %v108 = vrot.slane %v103, %v107
  %vm110 = vcmask 523264
  %v112 = vsel %vm110, %v90, 0
  %114 = vmatprep.subr.bf16.mxu0 0
  %115 = vmatpush1.bf16.msra.mxu0 %v99
  %116 = vmatprep.subr.bf16.mxu0 0
  %117 = vmatpush1.bf16.msra.mxu0 %v100
  %118 = vmatprep.subr.bf16.mxu0 0
  %119 = vmatpush1.bf16.msra.mxu0 %v101
  %120 = vmatprep.subr.bf16.mxu0 0
  %121 = vmatpush1.bf16.msra.mxu0 %v102
  %122 = vmatprep.subr.bf16.mxu0 0
  %123 = vmatpush1.bf16.msra.mxu0 0
  %124 = vmatprep.subr.bf16.mxu0 0
  %125 = vmatpush1.bf16.msra.mxu0 0
  %126 = vmatprep.subr.bf16.mxu0 0
  %127 = vmatpush1.bf16.msra.mxu0 0
  %128 = vmatprep.subr.bf16.mxu0 0
  %129 = vmatpush1.bf16.msra.mxu0 0
  %130 = vmatprep.subr.bf16.mxu0 0
  %131 = vmatpush1.bf16.msra.mxu0 0
  %132 = vmatprep.subr.bf16.mxu0 0
  %133 = vmatpush1.bf16.msra.mxu0 0
  %134 = vmatprep.subr.bf16.mxu0 0
  %135 = vmatpush1.bf16.msra.mxu0 0
  %136 = vmatprep.subr.bf16.mxu0 0
  %137 = vmatpush1.bf16.msra.mxu0 0
  %138 = vmatprep.subr.bf16.mxu0 0
  %139 = vmatpush1.bf16.msra.mxu0 0
  %140 = vmatprep.subr.bf16.mxu0 0
  %141 = vmatpush1.bf16.msra.mxu0 0
  %142 = vmatprep.subr.bf16.mxu0 0
  %143 = vmatpush1.bf16.msra.mxu0 0
  %144 = vmatprep.subr.bf16.mxu0 0
  %145 = vmatpush1.bf16.msra.mxu0 0
  %146 = vmatprep.mubr.bf16.mxu0 0
  %147 = vmatmul.mubr.bf16.gmra.mrb[0].mxu0 %v112
  %v148 = vpop.f32.mrb[0].mxu0
  %v149 = vadd.f32 %v108, %v148
  %v150 = vpop.f32.mrb[0].mxu0
  %v151 = vpop.f32.mrb[0].mxu0
  %v152 = vadd.f32 %v108, %v151
  %v153 = vpop.f32.mrb[0].mxu0
  %154 = vdwg.mxu0
  %v155 = vadd.f32 %v27, %v149
  %v156 = vadd.f32 %v28, %v152
  %v157 = vsel %vm43, %v155, 0.0
  %158 = vadd.xlane.f32.xlu0 %v157
  %v159 = vpop.xlane.xlu0 %158
  %v160 = vsel %vm43, %v156, 0.0
  %161 = vadd.xlane.f32.xlu0 %v160
  %v162 = vpop.xlane.xlu0 %161
  %v163 = vrcp.pop 32.0
  %v164 = vmul.f32 %v159, %v163
  %v165 = vmul.f32 %v162, %v163
  %v166 = vsub.f32 %v155, %v164
  %v167 = vsub.f32 %v156, %v165
  %v168 = vmul.f32 %v166, %v166
  %v169 = vmul.f32 %v167, %v167
  %v170 = vsel %vm43, %v168, 0.0
  %171 = vadd.xlane.f32.xlu0 %v170
  %v172 = vpop.xlane.xlu0 %171
  %v173 = vsel %vm43, %v169, 0.0
  %174 = vadd.xlane.f32.xlu0 %v173
  %v175 = vpop.xlane.xlu0 %174
  %v176 = vmul.f32 %v172, %v163
  %v177 = vmul.f32 %v175, %v163
  %v178 = vadd.f32 %v176, 1e-05
  %v179 = vadd.f32 %v177, 1e-05
  %v180 = vrsqrt.pop %v178
  %v181 = vrsqrt.pop %v179
  %v182 = vmul.f32 %v166, %v180
  %v183 = vmul.f32 %v167, %v181
  %v184 = vld [vmem:[%s5] sm:$0x1]
  %v186 = vlaneseq
  %v187 = vshrl.u32 %v186, 7
  %v188 = vsub.s32 0, %v187
  %v189 = vrot.slane %v184, %v188
  %v191 = vmul.f32 %v182, %v189
  %v192 = vmul.f32 %v183, %v189
  %v193 = vld [vmem:[%s6] sm:$0x1]
  %v195 = vlaneseq
  %v196 = vshrl.u32 %v195, 7
  %v197 = vsub.s32 0, %v196
  %v198 = vrot.slane %v193, %v197
  %v200 = vadd.f32 %v191, %v198
  %v201 = vadd.f32 %v192, %v198
  %202 = vst.msk [vmem:[%s7] sm:$0xff] %vm43, %v200
  %203 = vst.msk [vmem:[%s7 + $0x8] sm:$0xff] %vm43, %v201
  // Predicated region
  $region30: #{transformer_forward.28} parent=0 // pred_check
    _
  $region31: #{transformer_forward.28} parent=0 // pred_check_branch
    %205 = sbr.rel (0) target = $region33
  $region32: #{transformer_forward.28} parent=0 // pred_region
    _
  $region33: #{transformer_forward.28} parent=0 // pred_fallthru
    _
  // Predicated region
  $region34: #{transformer_forward.28} parent=0 // pred_check
    _
  $region35: #{transformer_forward.28} parent=0 // pred_check_branch
    %207 = sbr.rel (0) target = $region37
  $region36: #{transformer_forward.28} parent=0 // pred_region
    _
  $region37: #{transformer_forward.28} parent=0 // pred_fallthru
    _

// kernel: transformer_forward.37
$region0: #{transformer_forward.37}
  #allocation0 [shape = 'u32[]', space=smem, size = 0x4, offset = 0x4, fixed_abs, tag = 'smem constant byte address 0x4 - core index']
  #allocation1 [shape = 'u32[144,128]{1,0:T(1,128)}', space=vmem, size = 0x12000, scoped, tag = 'internal scratch']
  %s0 = inlined_call_operand.vmem [shape: f32[16,32], index: 0, kind: input, shape index: {}]
  %s1 = inlined_call_operand.vmem [shape: f32[32,64], index: 1, kind: input, shape index: {}]
  %s2 = inlined_call_operand.vmem [shape: f32[1,64], index: 2, kind: input, shape index: {}]
  %s3 = inlined_call_operand.vmem [shape: f32[16,64], index: 3, kind: output, shape index: {}]
  %s4 = sld [smem:[#allocation0]]
  $region22: #{transformer_forward.37} parent=0
    _
  %s6 = ssub.s32 1, %s4
  %s7 = scalar_select 0, %s6, %s4
  // Predicated region
  $region2: #{transformer_forward.37} parent=0 // pred_check
    _
  $region3: #{transformer_forward.37} parent=0 // pred_check_branch
    %9 = sbr.rel (0) target = $region5
  $region4: #{transformer_forward.37} parent=0 // pred_region
    _
  $region5: #{transformer_forward.37} parent=0 // pred_fallthru
    _
  // Predicated region
  $region6: #{transformer_forward.37} parent=0 // pred_check
    _
  $region7: #{transformer_forward.37} parent=0 // pred_check_branch
    %11 = sbr.rel (0) target = $region9
  $region8: #{transformer_forward.37} parent=0 // pred_region
    _
  $region9: #{transformer_forward.37} parent=0 // pred_fallthru
    _
  // Predicated region
  $region10: #{transformer_forward.37} parent=0 // pred_check
    _
  $region11: #{transformer_forward.37} parent=0 // pred_check_branch
    %13 = sbr.rel (0) target = $region13
  $region12: #{transformer_forward.37} parent=0 // pred_region
    _
  $region13: #{transformer_forward.37} parent=0 // pred_fallthru
    _
  %v15 = vld [vmem:[%s0] sm:$0xff]
  %v16 = vld [vmem:[%s0 + $0x8] sm:$0xff]
  %v17 = vpack.c.bf16 %v16, %v15
  %v18 = vld [vmem:[%s1] sm:$0xff]
  %v19 = vld [vmem:[%s1 + $0x8] sm:$0xff]
  %v20 = vld [vmem:[%s1 + $0x10] sm:$0xff]
  %v21 = vld [vmem:[%s1 + $0x18] sm:$0xff]
  %v22 = vpack.c.bf16 %v19, %v18
  %v23 = vpack.c.bf16 %v21, %v20
  %v24 = vld [vmem:[%s2] sm:$0x1]
  %v26 = vlaneseq
  %v27 = vshrl.u32 %v26, 7
  %v28 = vsub.s32 0, %v27
  %v29 = vrot.slane %v24, %v28
  %vm31 = vcmask 261120
  %v33 = vsel %vm31, %v17, 0
  %35 = vmatprep.subr.bf16.mxu0 0
  %36 = vmatpush1.bf16.msra.mxu0 %v22
  %37 = vmatprep.subr.bf16.mxu0 0
  %38 = vmatpush1.bf16.msra.mxu0 %v23
  %39 = vmatprep.subr.bf16.mxu0 0
  %40 = vmatpush1.bf16.msra.mxu0 0
  %41 = vmatprep.subr.bf16.mxu0 0
  %42 = vmatpush1.bf16.msra.mxu0 0
  %43 = vmatprep.subr.bf16.mxu0 0
  %44 = vmatpush1.bf16.msra.mxu0 0
  %45 = vmatprep.subr.bf16.mxu0 0
  %46 = vmatpush1.bf16.msra.mxu0 0
  %47 = vmatprep.subr.bf16.mxu0 0
  %48 = vmatpush1.bf16.msra.mxu0 0
  %49 = vmatprep.subr.bf16.mxu0 0
  %50 = vmatpush1.bf16.msra.mxu0 0
  %51 = vmatprep.subr.bf16.mxu0 0
  %52 = vmatpush1.bf16.msra.mxu0 0
  %53 = vmatprep.subr.bf16.mxu0 0
  %54 = vmatpush1.bf16.msra.mxu0 0
  %55 = vmatprep.subr.bf16.mxu0 0
  %56 = vmatpush1.bf16.msra.mxu0 0
  %57 = vmatprep.subr.bf16.mxu0 0
  %58 = vmatpush1.bf16.msra.mxu0 0
  %59 = vmatprep.subr.bf16.mxu0 0
  %60 = vmatpush1.bf16.msra.mxu0 0
  %61 = vmatprep.subr.bf16.mxu0 0
  %62 = vmatpush1.bf16.msra.mxu0 0
  %63 = vmatprep.subr.bf16.mxu0 0
  %64 = vmatpush1.bf16.msra.mxu0 0
  %65 = vmatprep.subr.bf16.mxu0 0
  %66 = vmatpush1.bf16.msra.mxu0 0
  %67 = vmatprep.mubr.bf16.mxu0 0
  %68 = vmatmul.mubr.bf16.gmra.mrb[0].mxu0 %v33
  %v69 = vpop.f32.mrb[0].mxu0
  %v70 = vadd.f32 %v29, %v69
  %v71 = vpop.f32.mrb[0].mxu0
  %v72 = vpop.f32.mrb[0].mxu0
  %v73 = vadd.f32 %v29, %v72
  %v74 = vpop.f32.mrb[0].mxu0
  %75 = vdwg.mxu0
  %vm76 = vcmask 523264
  %77 = vst.msk [vmem:[%s3] sm:$0xff] %vm76, %v70
  %78 = vst.msk [vmem:[%s3 + $0x8] sm:$0xff] %vm76, %v73
  // Predicated region
  $region14: #{transformer_forward.37} parent=0 // pred_check
    _
  $region15: #{transformer_forward.37} parent=0 // pred_check_branch
    %80 = sbr.rel (0) target = $region17
  $region16: #{transformer_forward.37} parent=0 // pred_region
    _
  $region17: #{transformer_forward.37} parent=0 // pred_fallthru
    _
  // Predicated region
  $region18: #{transformer_forward.37} parent=0 // pred_check
    _
  $region19: #{transformer_forward.37} parent=0 // pred_check_branch
    %82 = sbr.rel (0) target = $region21
  $region20: #{transformer_forward.37} parent=0 // pred_region
    _
  $region21: #{transformer_forward.37} parent=0 // pred_fallthru
    _

// kernel: transformer_forward.49
$region0: #{transformer_forward.49}
  #allocation0 [shape = 'u32[]', space=smem, size = 0x4, offset = 0x4, fixed_abs, tag = 'smem constant byte address 0x4 - core index']
  #allocation1 [shape = 'u32[144,128]{1,0:T(1,128)}', space=vmem, size = 0x12000, scoped, tag = 'internal scratch']
  %s0 = inlined_call_operand.vmem [shape: f32[16,32], index: 0, kind: input, shape index: {}]
  %s1 = inlined_call_operand.vmem [shape: f32[32,13], index: 1, kind: input, shape index: {}]
  %s2 = inlined_call_operand.vmem [shape: f32[1,13], index: 2, kind: input, shape index: {}]
  %s3 = inlined_call_operand.hbm [shape: f32[16,13], index: 3, kind: output, shape index: {}]
  %s4 = sld [smem:[#allocation0]]
  $region22: #{transformer_forward.49} parent=0
    _
  %s6 = ssub.s32 1, %s4
  %s7 = scalar_select 0, %s6, %s4
  $region1: #{transformer_forward.49} parent=0
    #allocation2 [shape = 'u8[8192]{0}', space=vmem, size = 0x2000, scoped, tag = 'output window, operand 0, single buffered']
    #allocation3 [shape = 's32[1]{0}', space=sflag, size = 0x4, scoped, tag = 'scoped memory for transformer_forward.49']
    %8 = vsyncpa [#allocation3], 0
    // Predicated region
    $region2: #{transformer_forward.49} parent=1 // pred_check
      _
    $region3: #{transformer_forward.49} parent=1 // pred_check_branch
      %10 = sbr.rel (0) target = $region5
    $region4: #{transformer_forward.49} parent=1 // pred_region
      _
    $region5: #{transformer_forward.49} parent=1 // pred_fallthru
      _
    // Predicated region
    $region6: #{transformer_forward.49} parent=1 // pred_check
      _
    $region7: #{transformer_forward.49} parent=1 // pred_check_branch
      %12 = sbr.rel (0) target = $region9
    $region8: #{transformer_forward.49} parent=1 // pred_region
      _
    $region9: #{transformer_forward.49} parent=1 // pred_fallthru
      _
    // Predicated region
    $region10: #{transformer_forward.49} parent=1 // pred_check
      _
    $region11: #{transformer_forward.49} parent=1 // pred_check_branch
      %14 = sbr.rel (0) target = $region13
    $region12: #{transformer_forward.49} parent=1 // pred_region
      _
    $region13: #{transformer_forward.49} parent=1 // pred_fallthru
      _
    %v16 = vld [vmem:[%s0] sm:$0xff]
    %v17 = vld [vmem:[%s0 + $0x8] sm:$0xff]
    %v18 = vpack.c.bf16 %v17, %v16
    %v19 = vld [vmem:[%s1] sm:$0xff]
    %v20 = vld [vmem:[%s1 + $0x8] sm:$0xff]
    %v21 = vld [vmem:[%s1 + $0x10] sm:$0xff]
    %v22 = vld [vmem:[%s1 + $0x18] sm:$0xff]
    %v23 = vpack.c.bf16 %v20, %v19
    %v24 = vpack.c.bf16 %v22, %v21
    %v25 = vld [vmem:[%s2] sm:$0x1]
    %v27 = vlaneseq
    %v28 = vshrl.u32 %v27, 7
    %v29 = vsub.s32 0, %v28
    %v30 = vrot.slane %v25, %v29
    %vm32 = vcmask 261120
    %v34 = vsel %vm32, %v18, 0
    %36 = vmatprep.subr.bf16.mxu0 0
    %37 = vmatpush1.bf16.msra.mxu0 %v23
    %38 = vmatprep.subr.bf16.mxu0 0
    %39 = vmatpush1.bf16.msra.mxu0 %v24
    %40 = vmatprep.subr.bf16.mxu0 0
    %41 = vmatpush1.bf16.msra.mxu0 0
    %42 = vmatprep.subr.bf16.mxu0 0
    %43 = vmatpush1.bf16.msra.mxu0 0
    %44 = vmatprep.subr.bf16.mxu0 0
    %45 = vmatpush1.bf16.msra.mxu0 0
    %46 = vmatprep.subr.bf16.mxu0 0
    %47 = vmatpush1.bf16.msra.mxu0 0
    %48 = vmatprep.subr.bf16.mxu0 0
    %49 = vmatpush1.bf16.msra.mxu0 0
    %50 = vmatprep.subr.bf16.mxu0 0
    %51 = vmatpush1.bf16.msra.mxu0 0
    %52 = vmatprep.subr.bf16.mxu0 0
    %53 = vmatpush1.bf16.msra.mxu0 0
    %54 = vmatprep.subr.bf16.mxu0 0
    %55 = vmatpush1.bf16.msra.mxu0 0
    %56 = vmatprep.subr.bf16.mxu0 0
    %57 = vmatpush1.bf16.msra.mxu0 0
    %58 = vmatprep.subr.bf16.mxu0 0
    %59 = vmatpush1.bf16.msra.mxu0 0
    %60 = vmatprep.subr.bf16.mxu0 0
    %61 = vmatpush1.bf16.msra.mxu0 0
    %62 = vmatprep.subr.bf16.mxu0 0
    %63 = vmatpush1.bf16.msra.mxu0 0
    %64 = vmatprep.subr.bf16.mxu0 0
    %65 = vmatpush1.bf16.msra.mxu0 0
    %66 = vmatprep.subr.bf16.mxu0 0
    %67 = vmatpush1.bf16.msra.mxu0 0
    %68 = vmatprep.mubr.bf16.mxu0 0
    %69 = vmatmul.mubr.bf16.gmra.mrb[0].mxu0 %v34
    %v70 = vpop.f32.mrb[0].mxu0
    %v71 = vadd.f32 %v30, %v70
    %v72 = vpop.f32.mrb[0].mxu0
    %v73 = vpop.f32.mrb[0].mxu0
    %v74 = vadd.f32 %v30, %v73
    %v75 = vpop.f32.mrb[0].mxu0
    %76 = vdwg.mxu0
    %vm77 = vcmask 105472
    %v78 = vsel %vm77, %v71, -inf
    %79 = vmax.xlane.f32.xlu0 %v78
    %v80 = vpop.xlane.xlu0 %79
    %v81 = vsel %vm77, %v74, -inf
    %82 = vmax.xlane.f32.xlu0 %v81
    %v83 = vpop.xlane.xlu0 %82
    %v84 = vsub.f32 %v71, %v80
    %v85 = vsub.f32 %v74, %v83
    %v86 = vmul.f32 %v84, 1.442695
    %v87 = vpow.pop %v86
    %v88 = vmul.f32 %v85, 1.442695
    %v89 = vpow.pop %v88
    %v90 = vsel %vm77, %v87, 0.0
    %91 = vadd.xlane.f32.xlu0 %v90
    %v92 = vpop.xlane.xlu0 %91
    %v93 = vsel %vm77, %v89, 0.0
    %94 = vadd.xlane.f32.xlu0 %v93
    %v95 = vpop.xlane.xlu0 %94
    %v96 = vlog2.pop %v92
    %v97 = vmul.f32 %v96, 0.6931472
    %v98 = vlog2.pop %v95
    %v99 = vmul.f32 %v98, 0.6931472
    %v100 = vsub.f32 %v84, %v97
    %v101 = vsub.f32 %v85, %v99
    %102 = vst.msk [vmem:[#allocation2] sm:$0xff] %vm77, %v100
    %103 = vst.msk [vmem:[#allocation2 + $0x8] sm:$0xff] %vm77, %v101
    // Predicated region
    $region14: #{transformer_forward.49} parent=1 // pred_check
      _
    $region15: #{transformer_forward.49} parent=1 // pred_check_branch
      %105 = sbr.rel (0) target = $region17
    $region16: #{transformer_forward.49} parent=1 // pred_region
      %s107 = ssub.s32 256, 256
      %108 = vsyncadd [#allocation3], %s107
      %s109 = sshll.u32 [#allocation2], 4
      %s110 = int_to_ptr.vmem [resolvable:$true] %s109
      %115 = dma.vmem_to_hbm [thread:$0]  %s110, 256, %s3, [#allocation3], 128, 128, 8
    $region17: #{transformer_forward.49} parent=1 // pred_fallthru
      _
    // Predicated region
    $region18: #{transformer_forward.49} parent=1 // pred_check
      _
    $region19: #{transformer_forward.49} parent=1 // pred_check_branch
      %117 = sbr.rel (0) target = $region21
    $region20: #{transformer_forward.49} parent=1 // pred_region
      %118 = dma.done [#allocation3], 256
    $region21: #{transformer_forward.49} parent=1 // pred_fallthru
      _
    %119 = vsyncpa [#allocation3], 1

</llo_original>
